<compile_context>
chip_gen: v6e
topology: v6e:2x2x1
jax: 0.10.0
libtpu: 0.0.40
codegen_flags: <defaults>
</compile_context>

<pallas_src>
import functools

import jax
import jax.numpy as jnp
from jax import lax
from jax.experimental import pallas as pl
from jax.experimental.pallas import tpu as pltpu


def _embeddings_kernel(
    # scalar-prefetch refs (SMEM): token ids, (B, S) int32
    input_ids_ref, token_type_ids_ref, position_ids_ref, hops_ids_ref,
    # tensor inputs
    word_hbm_ref,                     # HBM (pl.ANY): (vocab, H)
    pos_ref, type_ref, hops_ref,      # VMEM-resident small tables
    gamma_ref, beta_ref,              # VMEM (1, H)
    # output
    out_ref,                          # VMEM (1, TILE_S, H)
    # scratch
    word_rows, small_rows, copy_sems,
    *, tile_s, hidden, eps,
):
    b = pl.program_id(0)
    st = pl.program_id(1)
    base = st * tile_s

    # 1) Kick off the HBM gather of this tile's word-embedding rows.
    for i in range(tile_s):
        wid = input_ids_ref[b, base + i]
        pltpu.make_async_copy(
            word_hbm_ref.at[pl.ds(wid, 1), :],
            word_rows.at[pl.ds(i, 1), :],
            copy_sems.at[i],
        ).start()

    # 2) Gather + sum the small VMEM-resident tables while the DMAs fly.
    #    (Each row upcast to f32 before summing so bf16 tables keep accuracy.)
    for i in range(tile_s):
        tid = token_type_ids_ref[b, base + i]
        pid = position_ids_ref[b, base + i]
        hid = hops_ids_ref[b, base + i]
        small_rows[pl.ds(i, 1), :] = (
            type_ref[pl.ds(tid, 1), :].astype(jnp.float32)
            + pos_ref[pl.ds(pid, 1), :].astype(jnp.float32)
            + hops_ref[pl.ds(hid, 1), :].astype(jnp.float32))

    # 3) Wait for the word-row DMAs.
    for i in range(tile_s):
        pltpu.make_async_copy(
            word_hbm_ref.at[pl.ds(0, 1), :],      # shape-only; sem carries the wait
            word_rows.at[pl.ds(i, 1), :],
            copy_sems.at[i],
        ).wait()

    # 4) Dense tile math: add + fused-stat LayerNorm + scale/shift, one store.
    x = word_rows[...].astype(jnp.float32) + small_rows[...]      # (TILE_S, H)
    inv_h = 1.0 / float(hidden)
    mean = jnp.sum(x, axis=-1, keepdims=True) * inv_h
    mean_sq = jnp.sum(x * x, axis=-1, keepdims=True) * inv_h
    var = mean_sq - mean * mean
    inv = lax.rsqrt(var + eps)                                     # EUP slot
    y = (x - mean) * inv * gamma_ref[...].astype(jnp.float32) \
        + beta_ref[...].astype(jnp.float32)
    out_ref[0, :, :] = y.astype(out_ref.dtype)


def bert_embeddings(input_ids, token_type_ids, position_ids, hops_ids,
                    word_tab, pos_tab, type_tab, hops_tab, gamma, beta,
                    *, eps=1e-12, tile_s=8, out_dtype=jnp.float32):
    B, S = input_ids.shape
    H = word_tab.shape[1]

    tile_s = min(tile_s, S)
    assert S % tile_s == 0, "seq_len must be divisible by tile_s"

    gamma2 = gamma.reshape(1, H)
    beta2 = beta.reshape(1, H)

    kernel = functools.partial(_embeddings_kernel,
                               tile_s=tile_s, hidden=H, eps=eps)

    grid_spec = pltpu.PrefetchScalarGridSpec(
        num_scalar_prefetch=4,
        grid=(B, S // tile_s),
        in_specs=[
            pl.BlockSpec(memory_space=pl.ANY),                       # word table stays in HBM
            pl.BlockSpec(pos_tab.shape, lambda b, s, *refs: (0, 0)),
            pl.BlockSpec(type_tab.shape, lambda b, s, *refs: (0, 0)),
            pl.BlockSpec(hops_tab.shape, lambda b, s, *refs: (0, 0)),
            pl.BlockSpec((1, H), lambda b, s, *refs: (0, 0)),
            pl.BlockSpec((1, H), lambda b, s, *refs: (0, 0)),
        ],
        out_specs=pl.BlockSpec((1, tile_s, H), lambda b, s, *refs: (b, s, 0)),
        scratch_shapes=[
            pltpu.VMEM((tile_s, H), word_tab.dtype),   # gathered word rows
            pltpu.VMEM((tile_s, H), jnp.float32),      # sum of small-table rows
            pltpu.SemaphoreType.DMA((tile_s,)),        # one sem per row DMA
        ],
    )

    return pl.pallas_call(
        kernel,
        out_shape=jax.ShapeDtypeStruct((B, S, H), out_dtype),
        grid_spec=grid_spec,
        compiler_params=pltpu.CompilerParams(
            dimension_semantics=("parallel", "parallel")),
    )(input_ids, token_type_ids, position_ids, hops_ids,
      word_tab, pos_tab, type_tab, hops_tab, gamma2, beta2)


def _reference(input_ids, token_type_ids, position_ids, hops_ids,
               word_tab, pos_tab, type_tab, hops_tab, gamma, beta, eps=1e-12):
    w = word_tab.astype(jnp.float32)
    p = pos_tab.astype(jnp.float32)
    t = type_tab.astype(jnp.float32)
    h = hops_tab.astype(jnp.float32)
    emb = (jnp.take(w, input_ids, axis=0)
           + jnp.take(t, token_type_ids, axis=0)
           + jnp.take(p, position_ids, axis=0)
           + jnp.take(h, hops_ids, axis=0))
    mean = jnp.mean(emb, axis=-1, keepdims=True)
    var = jnp.mean((emb - mean) ** 2, axis=-1, keepdims=True)
    return ((emb - mean) * lax.rsqrt(var + eps) * gamma.astype(jnp.float32)
            + beta.astype(jnp.float32))


if __name__ == "__main__":
    # Config (small, synthetic)
    B, S, H = 2, 8, 128
    vocab_size = 64
    max_position_embeddings = 32
    type_vocab_size = 2
    hops_size = 4
    pad_token_id = 0
    eps = 1e-12

    key = jax.random.PRNGKey(0)
    ks = jax.random.split(key, 10)

    # Deterministic parameter init (nn.Embedding ~ N(0,1); padding row zeroed)
    word_tab = jax.random.normal(ks[0], (vocab_size, H), jnp.float32)
    word_tab = word_tab.at[pad_token_id].set(0.0)
    pos_tab = jax.random.normal(ks[1], (max_position_embeddings, H), jnp.float32)
    type_tab = jax.random.normal(ks[2], (type_vocab_size, H), jnp.float32)
    hops_tab = jax.random.normal(ks[3], (hops_size, H), jnp.float32)
    gamma = 1.0 + 0.1 * jax.random.normal(ks[6], (H,), jnp.float32)
    beta = 0.1 * jax.random.normal(ks[7], (H,), jnp.float32)

    # Inputs
    input_ids = jax.random.randint(ks[4], (B, S), 0, vocab_size, jnp.int32)
    token_type_ids = jnp.zeros((B, S), jnp.int32)                            # default path
    position_ids = jnp.broadcast_to(jnp.arange(S, dtype=jnp.int32), (B, S))  # default path
    hops_ids = jax.random.randint(ks[5], (B, S), 0, hops_size, jnp.int32)

    # --- f32 tables (faithful to the PyTorch module defaults) ---
    out = bert_embeddings(input_ids, token_type_ids, position_ids, hops_ids,
                          word_tab, pos_tab, type_tab, hops_tab, gamma, beta,
                          eps=eps)
    out = jax.block_until_ready(out)
    ref = _reference(input_ids, token_type_ids, position_ids, hops_ids,
                     word_tab, pos_tab, type_tab, hops_tab, gamma, beta, eps)
    assert out.shape == (B, S, H)
    assert jnp.allclose(out, ref, atol=1e-4, rtol=1e-4), "f32 mismatch vs reference"

    # --- bf16 tables (bandwidth optimization; stats still accumulated in f32) ---
    word_bf16 = word_tab.astype(jnp.bfloat16)
    pos_bf16 = pos_tab.astype(jnp.bfloat16)
    type_bf16 = type_tab.astype(jnp.bfloat16)
    hops_bf16 = hops_tab.astype(jnp.bfloat16)
    out_bf = bert_embeddings(input_ids, token_type_ids, position_ids, hops_ids,
                             word_bf16, pos_bf16, type_bf16, hops_bf16,
                             gamma, beta, eps=eps)
    out_bf = jax.block_until_ready(out_bf)
    ref_bf = _reference(input_ids, token_type_ids, position_ids, hops_ids,
                        word_bf16, pos_bf16, type_bf16, hops_bf16,
                        gamma, beta, eps)
    assert jnp.allclose(out_bf, ref_bf, atol=1e-3, rtol=1e-3), "bf16 mismatch vs reference"

    print("KERNEL_OK")
</pallas_src>

<mosaic_0001>
module attributes {stable_mosaic.version = 11 : i64} {
  func.func @_embeddings_kernel(%arg0: i32, %arg1: i32, %arg2: memref<2x8xi32, #tpu.memory_space<smem>>, %arg3: memref<2x8xi32, #tpu.memory_space<smem>>, %arg4: memref<2x8xi32, #tpu.memory_space<smem>>, %arg5: memref<2x8xi32, #tpu.memory_space<smem>>, %arg6: memref<64x128xf32, #tpu.memory_space<any>>, %arg7: memref<32x128xf32, #tpu.memory_space<vmem>>, %arg8: memref<2x128xf32, #tpu.memory_space<vmem>>, %arg9: memref<4x128xf32, #tpu.memory_space<vmem>>, %arg10: memref<1x128xf32, #tpu.memory_space<vmem>>, %arg11: memref<1x128xf32, #tpu.memory_space<vmem>>, %arg12: memref<1x8x128xf32, #tpu.memory_space<vmem>>, %arg13: memref<8x128xf32, #tpu.memory_space<vmem>>, %arg14: memref<8x128xf32, #tpu.memory_space<vmem>>, %arg15: memref<8x!tpu.dma_semaphore, #tpu.memory_space<semaphore_mem>>) attributes {dimension_semantics = [#tpu.dimension_semantics<parallel>, #tpu.dimension_semantics<parallel>], iteration_bounds = array<i64: 2, 1>, scalar_prefetch = 4 : i64, scratch_operands = 3 : i64, tpu.core_type = #tpu.core_type<tc>, window_params = [{}, {pipeline_mode = #tpu.pipeline_mode<synchronous>, transform_indices = @transform_1, window_bounds = array<i64: 32, 128>}, {pipeline_mode = #tpu.pipeline_mode<synchronous>, transform_indices = @transform_2, window_bounds = array<i64: 2, 128>}, {pipeline_mode = #tpu.pipeline_mode<synchronous>, transform_indices = @transform_3, window_bounds = array<i64: 4, 128>}, {pipeline_mode = #tpu.pipeline_mode<synchronous>, transform_indices = @transform_4, window_bounds = array<i64: 1, 128>}, {pipeline_mode = #tpu.pipeline_mode<synchronous>, transform_indices = @transform_5, window_bounds = array<i64: 1, 128>}, {transform_indices = @transform_6, window_bounds = array<i64: 1, 8, 128>}]} {
    %c8_i32 = arith.constant 8 : i32
    %0 = arith.muli %arg1, %c8_i32 : i32
    %c0_i32 = arith.constant 0 : i32
    %1 = arith.addi %0, %c0_i32 : i32
    %2 = arith.index_cast %arg0 : i32 to index
    %3 = arith.index_cast %1 : i32 to index
    %4 = memref.load %arg2[%2, %3] : memref<2x8xi32, #tpu.memory_space<smem>>
    %c0_i32_0 = arith.constant 0 : i32
    %c0_i32_1 = arith.constant 0 : i32
    %5 = tpu.memref_slice %arg6[%4, %c0_i32_1] : memref<64x128xf32, #tpu.memory_space<any>> -> memref<1x128xf32, #tpu.memory_space<any>>
    %c0_i32_2 = arith.constant 0 : i32
    %c0_i32_3 = arith.constant 0 : i32
    %6 = tpu.memref_slice %arg13[%c0_i32_2, %c0_i32_3] : memref<8x128xf32, #tpu.memory_space<vmem>> -> memref<1x128xf32, #tpu.memory_space<vmem>>
    %7 = tpu.memref_slice %arg15[%c0_i32_0] : memref<8x!tpu.dma_semaphore, #tpu.memory_space<semaphore_mem>> -> memref<1x!tpu.dma_semaphore, #tpu.memory_space<semaphore_mem>>
    %8 = tpu.memref_squeeze %7 : memref<1x!tpu.dma_semaphore, #tpu.memory_space<semaphore_mem>> -> memref<!tpu.dma_semaphore, #tpu.memory_space<semaphore_mem>>
    tpu.enqueue_dma source(%5 : memref<1x128xf32, #tpu.memory_space<any>>) target(%6 : memref<1x128xf32, #tpu.memory_space<vmem>>) target_semaphore(%8 : memref<!tpu.dma_semaphore, #tpu.memory_space<semaphore_mem>>)
    %c1_i32 = arith.constant 1 : i32
    %9 = arith.addi %0, %c1_i32 : i32
    %10 = arith.index_cast %arg0 : i32 to index
    %11 = arith.index_cast %9 : i32 to index
    %12 = memref.load %arg2[%10, %11] : memref<2x8xi32, #tpu.memory_space<smem>>
    %c1_i32_4 = arith.constant 1 : i32
    %c0_i32_5 = arith.constant 0 : i32
    %13 = tpu.memref_slice %arg6[%12, %c0_i32_5] : memref<64x128xf32, #tpu.memory_space<any>> -> memref<1x128xf32, #tpu.memory_space<any>>
    %c1_i32_6 = arith.constant 1 : i32
    %c0_i32_7 = arith.constant 0 : i32
    %14 = tpu.memref_slice %arg13[%c1_i32_6, %c0_i32_7] : memref<8x128xf32, #tpu.memory_space<vmem>> -> memref<1x128xf32, #tpu.memory_space<vmem>>
    %15 = tpu.memref_slice %arg15[%c1_i32_4] : memref<8x!tpu.dma_semaphore, #tpu.memory_space<semaphore_mem>> -> memref<1x!tpu.dma_semaphore, #tpu.memory_space<semaphore_mem>>
    %16 = tpu.memref_squeeze %15 : memref<1x!tpu.dma_semaphore, #tpu.memory_space<semaphore_mem>> -> memref<!tpu.dma_semaphore, #tpu.memory_space<semaphore_mem>>
    tpu.enqueue_dma source(%13 : memref<1x128xf32, #tpu.memory_space<any>>) target(%14 : memref<1x128xf32, #tpu.memory_space<vmem>>) target_semaphore(%16 : memref<!tpu.dma_semaphore, #tpu.memory_space<semaphore_mem>>)
    %c2_i32 = arith.constant 2 : i32
    %17 = arith.addi %0, %c2_i32 : i32
    %18 = arith.index_cast %arg0 : i32 to index
    %19 = arith.index_cast %17 : i32 to index
    %20 = memref.load %arg2[%18, %19] : memref<2x8xi32, #tpu.memory_space<smem>>
    %c2_i32_8 = arith.constant 2 : i32
    %c0_i32_9 = arith.constant 0 : i32
    %21 = tpu.memref_slice %arg6[%20, %c0_i32_9] : memref<64x128xf32, #tpu.memory_space<any>> -> memref<1x128xf32, #tpu.memory_space<any>>
    %c2_i32_10 = arith.constant 2 : i32
    %c0_i32_11 = arith.constant 0 : i32
    %22 = tpu.memref_slice %arg13[%c2_i32_10, %c0_i32_11] : memref<8x128xf32, #tpu.memory_space<vmem>> -> memref<1x128xf32, #tpu.memory_space<vmem>>
    %23 = tpu.memref_slice %arg15[%c2_i32_8] : memref<8x!tpu.dma_semaphore, #tpu.memory_space<semaphore_mem>> -> memref<1x!tpu.dma_semaphore, #tpu.memory_space<semaphore_mem>>
    %24 = tpu.memref_squeeze %23 : memref<1x!tpu.dma_semaphore, #tpu.memory_space<semaphore_mem>> -> memref<!tpu.dma_semaphore, #tpu.memory_space<semaphore_mem>>
    tpu.enqueue_dma source(%21 : memref<1x128xf32, #tpu.memory_space<any>>) target(%22 : memref<1x128xf32, #tpu.memory_space<vmem>>) target_semaphore(%24 : memref<!tpu.dma_semaphore, #tpu.memory_space<semaphore_mem>>)
    %c3_i32 = arith.constant 3 : i32
    %25 = arith.addi %0, %c3_i32 : i32
    %26 = arith.index_cast %arg0 : i32 to index
    %27 = arith.index_cast %25 : i32 to index
    %28 = memref.load %arg2[%26, %27] : memref<2x8xi32, #tpu.memory_space<smem>>
    %c3_i32_12 = arith.constant 3 : i32
    %c0_i32_13 = arith.constant 0 : i32
    %29 = tpu.memref_slice %arg6[%28, %c0_i32_13] : memref<64x128xf32, #tpu.memory_space<any>> -> memref<1x128xf32, #tpu.memory_space<any>>
    %c3_i32_14 = arith.constant 3 : i32
    %c0_i32_15 = arith.constant 0 : i32
    %30 = tpu.memref_slice %arg13[%c3_i32_14, %c0_i32_15] : memref<8x128xf32, #tpu.memory_space<vmem>> -> memref<1x128xf32, #tpu.memory_space<vmem>>
    %31 = tpu.memref_slice %arg15[%c3_i32_12] : memref<8x!tpu.dma_semaphore, #tpu.memory_space<semaphore_mem>> -> memref<1x!tpu.dma_semaphore, #tpu.memory_space<semaphore_mem>>
    %32 = tpu.memref_squeeze %31 : memref<1x!tpu.dma_semaphore, #tpu.memory_space<semaphore_mem>> -> memref<!tpu.dma_semaphore, #tpu.memory_space<semaphore_mem>>
    tpu.enqueue_dma source(%29 : memref<1x128xf32, #tpu.memory_space<any>>) target(%30 : memref<1x128xf32, #tpu.memory_space<vmem>>) target_semaphore(%32 : memref<!tpu.dma_semaphore, #tpu.memory_space<semaphore_mem>>)
    %c4_i32 = arith.constant 4 : i32
    %33 = arith.addi %0, %c4_i32 : i32
    %34 = arith.index_cast %arg0 : i32 to index
    %35 = arith.index_cast %33 : i32 to index
    %36 = memref.load %arg2[%34, %35] : memref<2x8xi32, #tpu.memory_space<smem>>
    %c4_i32_16 = arith.constant 4 : i32
    %c0_i32_17 = arith.constant 0 : i32
    %37 = tpu.memref_slice %arg6[%36, %c0_i32_17] : memref<64x128xf32, #tpu.memory_space<any>> -> memref<1x128xf32, #tpu.memory_space<any>>
    %c4_i32_18 = arith.constant 4 : i32
    %c0_i32_19 = arith.constant 0 : i32
    %38 = tpu.memref_slice %arg13[%c4_i32_18, %c0_i32_19] : memref<8x128xf32, #tpu.memory_space<vmem>> -> memref<1x128xf32, #tpu.memory_space<vmem>>
    %39 = tpu.memref_slice %arg15[%c4_i32_16] : memref<8x!tpu.dma_semaphore, #tpu.memory_space<semaphore_mem>> -> memref<1x!tpu.dma_semaphore, #tpu.memory_space<semaphore_mem>>
    %40 = tpu.memref_squeeze %39 : memref<1x!tpu.dma_semaphore, #tpu.memory_space<semaphore_mem>> -> memref<!tpu.dma_semaphore, #tpu.memory_space<semaphore_mem>>
    tpu.enqueue_dma source(%37 : memref<1x128xf32, #tpu.memory_space<any>>) target(%38 : memref<1x128xf32, #tpu.memory_space<vmem>>) target_semaphore(%40 : memref<!tpu.dma_semaphore, #tpu.memory_space<semaphore_mem>>)
    %c5_i32 = arith.constant 5 : i32
    %41 = arith.addi %0, %c5_i32 : i32
    %42 = arith.index_cast %arg0 : i32 to index
    %43 = arith.index_cast %41 : i32 to index
    %44 = memref.load %arg2[%42, %43] : memref<2x8xi32, #tpu.memory_space<smem>>
    %c5_i32_20 = arith.constant 5 : i32
    %c0_i32_21 = arith.constant 0 : i32
    %45 = tpu.memref_slice %arg6[%44, %c0_i32_21] : memref<64x128xf32, #tpu.memory_space<any>> -> memref<1x128xf32, #tpu.memory_space<any>>
    %c5_i32_22 = arith.constant 5 : i32
    %c0_i32_23 = arith.constant 0 : i32
    %46 = tpu.memref_slice %arg13[%c5_i32_22, %c0_i32_23] : memref<8x128xf32, #tpu.memory_space<vmem>> -> memref<1x128xf32, #tpu.memory_space<vmem>>
    %47 = tpu.memref_slice %arg15[%c5_i32_20] : memref<8x!tpu.dma_semaphore, #tpu.memory_space<semaphore_mem>> -> memref<1x!tpu.dma_semaphore, #tpu.memory_space<semaphore_mem>>
    %48 = tpu.memref_squeeze %47 : memref<1x!tpu.dma_semaphore, #tpu.memory_space<semaphore_mem>> -> memref<!tpu.dma_semaphore, #tpu.memory_space<semaphore_mem>>
    tpu.enqueue_dma source(%45 : memref<1x128xf32, #tpu.memory_space<any>>) target(%46 : memref<1x128xf32, #tpu.memory_space<vmem>>) target_semaphore(%48 : memref<!tpu.dma_semaphore, #tpu.memory_space<semaphore_mem>>)
    %c6_i32 = arith.constant 6 : i32
    %49 = arith.addi %0, %c6_i32 : i32
    %50 = arith.index_cast %arg0 : i32 to index
    %51 = arith.index_cast %49 : i32 to index
    %52 = memref.load %arg2[%50, %51] : memref<2x8xi32, #tpu.memory_space<smem>>
    %c6_i32_24 = arith.constant 6 : i32
    %c0_i32_25 = arith.constant 0 : i32
    %53 = tpu.memref_slice %arg6[%52, %c0_i32_25] : memref<64x128xf32, #tpu.memory_space<any>> -> memref<1x128xf32, #tpu.memory_space<any>>
    %c6_i32_26 = arith.constant 6 : i32
    %c0_i32_27 = arith.constant 0 : i32
    %54 = tpu.memref_slice %arg13[%c6_i32_26, %c0_i32_27] : memref<8x128xf32, #tpu.memory_space<vmem>> -> memref<1x128xf32, #tpu.memory_space<vmem>>
    %55 = tpu.memref_slice %arg15[%c6_i32_24] : memref<8x!tpu.dma_semaphore, #tpu.memory_space<semaphore_mem>> -> memref<1x!tpu.dma_semaphore, #tpu.memory_space<semaphore_mem>>
    %56 = tpu.memref_squeeze %55 : memref<1x!tpu.dma_semaphore, #tpu.memory_space<semaphore_mem>> -> memref<!tpu.dma_semaphore, #tpu.memory_space<semaphore_mem>>
    tpu.enqueue_dma source(%53 : memref<1x128xf32, #tpu.memory_space<any>>) target(%54 : memref<1x128xf32, #tpu.memory_space<vmem>>) target_semaphore(%56 : memref<!tpu.dma_semaphore, #tpu.memory_space<semaphore_mem>>)
    %c7_i32 = arith.constant 7 : i32
    %57 = arith.addi %0, %c7_i32 : i32
    %58 = arith.index_cast %arg0 : i32 to index
    %59 = arith.index_cast %57 : i32 to index
    %60 = memref.load %arg2[%58, %59] : memref<2x8xi32, #tpu.memory_space<smem>>
    %c7_i32_28 = arith.constant 7 : i32
    %c0_i32_29 = arith.constant 0 : i32
    %61 = tpu.memref_slice %arg6[%60, %c0_i32_29] : memref<64x128xf32, #tpu.memory_space<any>> -> memref<1x128xf32, #tpu.memory_space<any>>
    %c7_i32_30 = arith.constant 7 : i32
    %c0_i32_31 = arith.constant 0 : i32
    %62 = tpu.memref_slice %arg13[%c7_i32_30, %c0_i32_31] : memref<8x128xf32, #tpu.memory_space<vmem>> -> memref<1x128xf32, #tpu.memory_space<vmem>>
    %63 = tpu.memref_slice %arg15[%c7_i32_28] : memref<8x!tpu.dma_semaphore, #tpu.memory_space<semaphore_mem>> -> memref<1x!tpu.dma_semaphore, #tpu.memory_space<semaphore_mem>>
    %64 = tpu.memref_squeeze %63 : memref<1x!tpu.dma_semaphore, #tpu.memory_space<semaphore_mem>> -> memref<!tpu.dma_semaphore, #tpu.memory_space<semaphore_mem>>
    tpu.enqueue_dma source(%61 : memref<1x128xf32, #tpu.memory_space<any>>) target(%62 : memref<1x128xf32, #tpu.memory_space<vmem>>) target_semaphore(%64 : memref<!tpu.dma_semaphore, #tpu.memory_space<semaphore_mem>>)
    %c0_i32_32 = arith.constant 0 : i32
    %65 = arith.addi %0, %c0_i32_32 : i32
    %66 = arith.index_cast %arg0 : i32 to index
    %67 = arith.index_cast %65 : i32 to index
    %68 = memref.load %arg3[%66, %67] : memref<2x8xi32, #tpu.memory_space<smem>>
    %c0_i32_33 = arith.constant 0 : i32
    %69 = arith.addi %0, %c0_i32_33 : i32
    %70 = arith.index_cast %arg0 : i32 to index
    %71 = arith.index_cast %69 : i32 to index
    %72 = memref.load %arg4[%70, %71] : memref<2x8xi32, #tpu.memory_space<smem>>
    %c0_i32_34 = arith.constant 0 : i32
    %73 = arith.addi %0, %c0_i32_34 : i32
    %74 = arith.index_cast %arg0 : i32 to index
    %75 = arith.index_cast %73 : i32 to index
    %76 = memref.load %arg5[%74, %75] : memref<2x8xi32, #tpu.memory_space<smem>>
    %77 = arith.index_cast %68 : i32 to index
    %c0 = arith.constant 0 : index
    %78 = vector.load %arg8[%77, %c0] : memref<2x128xf32, #tpu.memory_space<vmem>>, vector<1x128xf32>
    %79 = arith.index_cast %72 : i32 to index
    %c0_35 = arith.constant 0 : index
    %80 = vector.load %arg7[%79, %c0_35] : memref<32x128xf32, #tpu.memory_space<vmem>>, vector<1x128xf32>
    %81 = arith.addf %78, %80 : vector<1x128xf32>
    %82 = arith.index_cast %76 : i32 to index
    %c0_36 = arith.constant 0 : index
    %83 = vector.load %arg9[%82, %c0_36] : memref<4x128xf32, #tpu.memory_space<vmem>>, vector<1x128xf32>
    %84 = arith.addf %81, %83 : vector<1x128xf32>
    %c0_37 = arith.constant 0 : index
    %c0_38 = arith.constant 0 : index
    %85 = vector.load %arg14[%c0_37, %c0_38] : memref<8x128xf32, #tpu.memory_space<vmem>>, vector<1x128xf32>
    tpu.vector_store %arg14[%c0_37, %c0_38], %84 {strides = array<i32>} : memref<8x128xf32, #tpu.memory_space<vmem>>, vector<1x128xf32>,
    %c1_i32_39 = arith.constant 1 : i32
    %86 = arith.addi %0, %c1_i32_39 : i32
    %87 = arith.index_cast %arg0 : i32 to index
    %88 = arith.index_cast %86 : i32 to index
    %89 = memref.load %arg3[%87, %88] : memref<2x8xi32, #tpu.memory_space<smem>>
    %c1_i32_40 = arith.constant 1 : i32
    %90 = arith.addi %0, %c1_i32_40 : i32
    %91 = arith.index_cast %arg0 : i32 to index
    %92 = arith.index_cast %90 : i32 to index
    %93 = memref.load %arg4[%91, %92] : memref<2x8xi32, #tpu.memory_space<smem>>
    %c1_i32_41 = arith.constant 1 : i32
    %94 = arith.addi %0, %c1_i32_41 : i32
    %95 = arith.index_cast %arg0 : i32 to index
    %96 = arith.index_cast %94 : i32 to index
    %97 = memref.load %arg5[%95, %96] : memref<2x8xi32, #tpu.memory_space<smem>>
    %98 = arith.index_cast %89 : i32 to index
    %c0_42 = arith.constant 0 : index
    %99 = vector.load %arg8[%98, %c0_42] : memref<2x128xf32, #tpu.memory_space<vmem>>, vector<1x128xf32>
    %100 = arith.index_cast %93 : i32 to index
    %c0_43 = arith.constant 0 : index
    %101 = vector.load %arg7[%100, %c0_43] : memref<32x128xf32, #tpu.memory_space<vmem>>, vector<1x128xf32>
    %102 = arith.addf %99, %101 : vector<1x128xf32>
    %103 = arith.index_cast %97 : i32 to index
    %c0_44 = arith.constant 0 : index
    %104 = vector.load %arg9[%103, %c0_44] : memref<4x128xf32, #tpu.memory_space<vmem>>, vector<1x128xf32>
    %105 = arith.addf %102, %104 : vector<1x128xf32>
    %c1 = arith.constant 1 : index
    %c0_45 = arith.constant 0 : index
    %106 = vector.load %arg14[%c1, %c0_45] : memref<8x128xf32, #tpu.memory_space<vmem>>, vector<1x128xf32>
    tpu.vector_store %arg14[%c1, %c0_45], %105 {strides = array<i32>} : memref<8x128xf32, #tpu.memory_space<vmem>>, vector<1x128xf32>,
    %c2_i32_46 = arith.constant 2 : i32
    %107 = arith.addi %0, %c2_i32_46 : i32
    %108 = arith.index_cast %arg0 : i32 to index
    %109 = arith.index_cast %107 : i32 to index
    %110 = memref.load %arg3[%108, %109] : memref<2x8xi32, #tpu.memory_space<smem>>
    %c2_i32_47 = arith.constant 2 : i32
    %111 = arith.addi %0, %c2_i32_47 : i32
    %112 = arith.index_cast %arg0 : i32 to index
    %113 = arith.index_cast %111 : i32 to index
    %114 = memref.load %arg4[%112, %113] : memref<2x8xi32, #tpu.memory_space<smem>>
    %c2_i32_48 = arith.constant 2 : i32
    %115 = arith.addi %0, %c2_i32_48 : i32
    %116 = arith.index_cast %arg0 : i32 to index
    %117 = arith.index_cast %115 : i32 to index
    %118 = memref.load %arg5[%116, %117] : memref<2x8xi32, #tpu.memory_space<smem>>
    %119 = arith.index_cast %110 : i32 to index
    %c0_49 = arith.constant 0 : index
    %120 = vector.load %arg8[%119, %c0_49] : memref<2x128xf32, #tpu.memory_space<vmem>>, vector<1x128xf32>
    %121 = arith.index_cast %114 : i32 to index
    %c0_50 = arith.constant 0 : index
    %122 = vector.load %arg7[%121, %c0_50] : memref<32x128xf32, #tpu.memory_space<vmem>>, vector<1x128xf32>
    %123 = arith.addf %120, %122 : vector<1x128xf32>
    %124 = arith.index_cast %118 : i32 to index
    %c0_51 = arith.constant 0 : index
    %125 = vector.load %arg9[%124, %c0_51] : memref<4x128xf32, #tpu.memory_space<vmem>>, vector<1x128xf32>
    %126 = arith.addf %123, %125 : vector<1x128xf32>
    %c2 = arith.constant 2 : index
    %c0_52 = arith.constant 0 : index
    %127 = vector.load %arg14[%c2, %c0_52] : memref<8x128xf32, #tpu.memory_space<vmem>>, vector<1x128xf32>
    tpu.vector_store %arg14[%c2, %c0_52], %126 {strides = array<i32>} : memref<8x128xf32, #tpu.memory_space<vmem>>, vector<1x128xf32>,
    %c3_i32_53 = arith.constant 3 : i32
    %128 = arith.addi %0, %c3_i32_53 : i32
    %129 = arith.index_cast %arg0 : i32 to index
    %130 = arith.index_cast %128 : i32 to index
    %131 = memref.load %arg3[%129, %130] : memref<2x8xi32, #tpu.memory_space<smem>>
    %c3_i32_54 = arith.constant 3 : i32
    %132 = arith.addi %0, %c3_i32_54 : i32
    %133 = arith.index_cast %arg0 : i32 to index
    %134 = arith.index_cast %132 : i32 to index
    %135 = memref.load %arg4[%133, %134] : memref<2x8xi32, #tpu.memory_space<smem>>
    %c3_i32_55 = arith.constant 3 : i32
    %136 = arith.addi %0, %c3_i32_55 : i32
    %137 = arith.index_cast %arg0 : i32 to index
    %138 = arith.index_cast %136 : i32 to index
    %139 = memref.load %arg5[%137, %138] : memref<2x8xi32, #tpu.memory_space<smem>>
    %140 = arith.index_cast %131 : i32 to index
    %c0_56 = arith.constant 0 : index
    %141 = vector.load %arg8[%140, %c0_56] : memref<2x128xf32, #tpu.memory_space<vmem>>, vector<1x128xf32>
    %142 = arith.index_cast %135 : i32 to index
    %c0_57 = arith.constant 0 : index
    %143 = vector.load %arg7[%142, %c0_57] : memref<32x128xf32, #tpu.memory_space<vmem>>, vector<1x128xf32>
    %144 = arith.addf %141, %143 : vector<1x128xf32>
    %145 = arith.index_cast %139 : i32 to index
    %c0_58 = arith.constant 0 : index
    %146 = vector.load %arg9[%145, %c0_58] : memref<4x128xf32, #tpu.memory_space<vmem>>, vector<1x128xf32>
    %147 = arith.addf %144, %146 : vector<1x128xf32>
    %c3 = arith.constant 3 : index
    %c0_59 = arith.constant 0 : index
    %148 = vector.load %arg14[%c3, %c0_59] : memref<8x128xf32, #tpu.memory_space<vmem>>, vector<1x128xf32>
    tpu.vector_store %arg14[%c3, %c0_59], %147 {strides = array<i32>} : memref<8x128xf32, #tpu.memory_space<vmem>>, vector<1x128xf32>,
    %c4_i32_60 = arith.constant 4 : i32
    %149 = arith.addi %0, %c4_i32_60 : i32
    %150 = arith.index_cast %arg0 : i32 to index
    %151 = arith.index_cast %149 : i32 to index
    %152 = memref.load %arg3[%150, %151] : memref<2x8xi32, #tpu.memory_space<smem>>
    %c4_i32_61 = arith.constant 4 : i32
    %153 = arith.addi %0, %c4_i32_61 : i32
    %154 = arith.index_cast %arg0 : i32 to index
    %155 = arith.index_cast %153 : i32 to index
    %156 = memref.load %arg4[%154, %155] : memref<2x8xi32, #tpu.memory_space<smem>>
    %c4_i32_62 = arith.constant 4 : i32
    %157 = arith.addi %0, %c4_i32_62 : i32
    %158 = arith.index_cast %arg0 : i32 to index
    %159 = arith.index_cast %157 : i32 to index
    %160 = memref.load %arg5[%158, %159] : memref<2x8xi32, #tpu.memory_space<smem>>
    %161 = arith.index_cast %152 : i32 to index
    %c0_63 = arith.constant 0 : index
    %162 = vector.load %arg8[%161, %c0_63] : memref<2x128xf32, #tpu.memory_space<vmem>>, vector<1x128xf32>
    %163 = arith.index_cast %156 : i32 to index
    %c0_64 = arith.constant 0 : index
    %164 = vector.load %arg7[%163, %c0_64] : memref<32x128xf32, #tpu.memory_space<vmem>>, vector<1x128xf32>
    %165 = arith.addf %162, %164 : vector<1x128xf32>
    %166 = arith.index_cast %160 : i32 to index
    %c0_65 = arith.constant 0 : index
    %167 = vector.load %arg9[%166, %c0_65] : memref<4x128xf32, #tpu.memory_space<vmem>>, vector<1x128xf32>
    %168 = arith.addf %165, %167 : vector<1x128xf32>
    %c4 = arith.constant 4 : index
    %c0_66 = arith.constant 0 : index
    %169 = vector.load %arg14[%c4, %c0_66] : memref<8x128xf32, #tpu.memory_space<vmem>>, vector<1x128xf32>
    tpu.vector_store %arg14[%c4, %c0_66], %168 {strides = array<i32>} : memref<8x128xf32, #tpu.memory_space<vmem>>, vector<1x128xf32>,
    %c5_i32_67 = arith.constant 5 : i32
    %170 = arith.addi %0, %c5_i32_67 : i32
    %171 = arith.index_cast %arg0 : i32 to index
    %172 = arith.index_cast %170 : i32 to index
    %173 = memref.load %arg3[%171, %172] : memref<2x8xi32, #tpu.memory_space<smem>>
    %c5_i32_68 = arith.constant 5 : i32
    %174 = arith.addi %0, %c5_i32_68 : i32
    %175 = arith.index_cast %arg0 : i32 to index
    %176 = arith.index_cast %174 : i32 to index
    %177 = memref.load %arg4[%175, %176] : memref<2x8xi32, #tpu.memory_space<smem>>
    %c5_i32_69 = arith.constant 5 : i32
    %178 = arith.addi %0, %c5_i32_69 : i32
    %179 = arith.index_cast %arg0 : i32 to index
    %180 = arith.index_cast %178 : i32 to index
    %181 = memref.load %arg5[%179, %180] : memref<2x8xi32, #tpu.memory_space<smem>>
    %182 = arith.index_cast %173 : i32 to index
    %c0_70 = arith.constant 0 : index
    %183 = vector.load %arg8[%182, %c0_70] : memref<2x128xf32, #tpu.memory_space<vmem>>, vector<1x128xf32>
    %184 = arith.index_cast %177 : i32 to index
    %c0_71 = arith.constant 0 : index
    %185 = vector.load %arg7[%184, %c0_71] : memref<32x128xf32, #tpu.memory_space<vmem>>, vector<1x128xf32>
    %186 = arith.addf %183, %185 : vector<1x128xf32>
    %187 = arith.index_cast %181 : i32 to index
    %c0_72 = arith.constant 0 : index
    %188 = vector.load %arg9[%187, %c0_72] : memref<4x128xf32, #tpu.memory_space<vmem>>, vector<1x128xf32>
    %189 = arith.addf %186, %188 : vector<1x128xf32>
    %c5 = arith.constant 5 : index
    %c0_73 = arith.constant 0 : index
    %190 = vector.load %arg14[%c5, %c0_73] : memref<8x128xf32, #tpu.memory_space<vmem>>, vector<1x128xf32>
    tpu.vector_store %arg14[%c5, %c0_73], %189 {strides = array<i32>} : memref<8x128xf32, #tpu.memory_space<vmem>>, vector<1x128xf32>,
    %c6_i32_74 = arith.constant 6 : i32
    %191 = arith.addi %0, %c6_i32_74 : i32
    %192 = arith.index_cast %arg0 : i32 to index
    %193 = arith.index_cast %191 : i32 to index
    %194 = memref.load %arg3[%192, %193] : memref<2x8xi32, #tpu.memory_space<smem>>
    %c6_i32_75 = arith.constant 6 : i32
    %195 = arith.addi %0, %c6_i32_75 : i32
    %196 = arith.index_cast %arg0 : i32 to index
    %197 = arith.index_cast %195 : i32 to index
    %198 = memref.load %arg4[%196, %197] : memref<2x8xi32, #tpu.memory_space<smem>>
    %c6_i32_76 = arith.constant 6 : i32
    %199 = arith.addi %0, %c6_i32_76 : i32
    %200 = arith.index_cast %arg0 : i32 to index
    %201 = arith.index_cast %199 : i32 to index
    %202 = memref.load %arg5[%200, %201] : memref<2x8xi32, #tpu.memory_space<smem>>
    %203 = arith.index_cast %194 : i32 to index
    %c0_77 = arith.constant 0 : index
    %204 = vector.load %arg8[%203, %c0_77] : memref<2x128xf32, #tpu.memory_space<vmem>>, vector<1x128xf32>
    %205 = arith.index_cast %198 : i32 to index
    %c0_78 = arith.constant 0 : index
    %206 = vector.load %arg7[%205, %c0_78] : memref<32x128xf32, #tpu.memory_space<vmem>>, vector<1x128xf32>
    %207 = arith.addf %204, %206 : vector<1x128xf32>
    %208 = arith.index_cast %202 : i32 to index
    %c0_79 = arith.constant 0 : index
    %209 = vector.load %arg9[%208, %c0_79] : memref<4x128xf32, #tpu.memory_space<vmem>>, vector<1x128xf32>
    %210 = arith.addf %207, %209 : vector<1x128xf32>
    %c6 = arith.constant 6 : index
    %c0_80 = arith.constant 0 : index
    %211 = vector.load %arg14[%c6, %c0_80] : memref<8x128xf32, #tpu.memory_space<vmem>>, vector<1x128xf32>
    tpu.vector_store %arg14[%c6, %c0_80], %210 {strides = array<i32>} : memref<8x128xf32, #tpu.memory_space<vmem>>, vector<1x128xf32>,
    %c7_i32_81 = arith.constant 7 : i32
    %212 = arith.addi %0, %c7_i32_81 : i32
    %213 = arith.index_cast %arg0 : i32 to index
    %214 = arith.index_cast %212 : i32 to index
    %215 = memref.load %arg3[%213, %214] : memref<2x8xi32, #tpu.memory_space<smem>>
    %c7_i32_82 = arith.constant 7 : i32
    %216 = arith.addi %0, %c7_i32_82 : i32
    %217 = arith.index_cast %arg0 : i32 to index
    %218 = arith.index_cast %216 : i32 to index
    %219 = memref.load %arg4[%217, %218] : memref<2x8xi32, #tpu.memory_space<smem>>
    %c7_i32_83 = arith.constant 7 : i32
    %220 = arith.addi %0, %c7_i32_83 : i32
    %221 = arith.index_cast %arg0 : i32 to index
    %222 = arith.index_cast %220 : i32 to index
    %223 = memref.load %arg5[%221, %222] : memref<2x8xi32, #tpu.memory_space<smem>>
    %224 = arith.index_cast %215 : i32 to index
    %c0_84 = arith.constant 0 : index
    %225 = vector.load %arg8[%224, %c0_84] : memref<2x128xf32, #tpu.memory_space<vmem>>, vector<1x128xf32>
    %226 = arith.index_cast %219 : i32 to index
    %c0_85 = arith.constant 0 : index
    %227 = vector.load %arg7[%226, %c0_85] : memref<32x128xf32, #tpu.memory_space<vmem>>, vector<1x128xf32>
    %228 = arith.addf %225, %227 : vector<1x128xf32>
    %229 = arith.index_cast %223 : i32 to index
    %c0_86 = arith.constant 0 : index
    %230 = vector.load %arg9[%229, %c0_86] : memref<4x128xf32, #tpu.memory_space<vmem>>, vector<1x128xf32>
    %231 = arith.addf %228, %230 : vector<1x128xf32>
    %c7 = arith.constant 7 : index
    %c0_87 = arith.constant 0 : index
    %232 = vector.load %arg14[%c7, %c0_87] : memref<8x128xf32, #tpu.memory_space<vmem>>, vector<1x128xf32>
    tpu.vector_store %arg14[%c7, %c0_87], %231 {strides = array<i32>} : memref<8x128xf32, #tpu.memory_space<vmem>>, vector<1x128xf32>,
    %c0_i32_88 = arith.constant 0 : i32
    %c0_i32_89 = arith.constant 0 : i32
    %c0_i32_90 = arith.constant 0 : i32
    %233 = tpu.memref_slice %arg6[%c0_i32_89, %c0_i32_90] : memref<64x128xf32, #tpu.memory_space<any>> -> memref<1x128xf32, #tpu.memory_space<any>>
    %c0_i32_91 = arith.constant 0 : i32
    %c0_i32_92 = arith.constant 0 : i32
    %234 = tpu.memref_slice %arg13[%c0_i32_91, %c0_i32_92] : memref<8x128xf32, #tpu.memory_space<vmem>> -> memref<1x128xf32, #tpu.memory_space<vmem>>
    %235 = tpu.memref_slice %arg15[%c0_i32_88] : memref<8x!tpu.dma_semaphore, #tpu.memory_space<semaphore_mem>> -> memref<1x!tpu.dma_semaphore, #tpu.memory_space<semaphore_mem>>
    %236 = tpu.memref_squeeze %235 : memref<1x!tpu.dma_semaphore, #tpu.memory_space<semaphore_mem>> -> memref<!tpu.dma_semaphore, #tpu.memory_space<semaphore_mem>>
    tpu.wait_dma2 semaphore(%236 : memref<!tpu.dma_semaphore, #tpu.memory_space<semaphore_mem>>) src(%233 : memref<1x128xf32, #tpu.memory_space<any>>) dst(%234 : memref<1x128xf32, #tpu.memory_space<vmem>>)
    %c1_i32_93 = arith.constant 1 : i32
    %c0_i32_94 = arith.constant 0 : i32
    %c0_i32_95 = arith.constant 0 : i32
    %237 = tpu.memref_slice %arg6[%c0_i32_94, %c0_i32_95] : memref<64x128xf32, #tpu.memory_space<any>> -> memref<1x128xf32, #tpu.memory_space<any>>
    %c1_i32_96 = arith.constant 1 : i32
    %c0_i32_97 = arith.constant 0 : i32
    %238 = tpu.memref_slice %arg13[%c1_i32_96, %c0_i32_97] : memref<8x128xf32, #tpu.memory_space<vmem>> -> memref<1x128xf32, #tpu.memory_space<vmem>>
    %239 = tpu.memref_slice %arg15[%c1_i32_93] : memref<8x!tpu.dma_semaphore, #tpu.memory_space<semaphore_mem>> -> memref<1x!tpu.dma_semaphore, #tpu.memory_space<semaphore_mem>>
    %240 = tpu.memref_squeeze %239 : memref<1x!tpu.dma_semaphore, #tpu.memory_space<semaphore_mem>> -> memref<!tpu.dma_semaphore, #tpu.memory_space<semaphore_mem>>
    tpu.wait_dma2 semaphore(%240 : memref<!tpu.dma_semaphore, #tpu.memory_space<semaphore_mem>>) src(%237 : memref<1x128xf32, #tpu.memory_space<any>>) dst(%238 : memref<1x128xf32, #tpu.memory_space<vmem>>)
    %c2_i32_98 = arith.constant 2 : i32
    %c0_i32_99 = arith.constant 0 : i32
    %c0_i32_100 = arith.constant 0 : i32
    %241 = tpu.memref_slice %arg6[%c0_i32_99, %c0_i32_100] : memref<64x128xf32, #tpu.memory_space<any>> -> memref<1x128xf32, #tpu.memory_space<any>>
    %c2_i32_101 = arith.constant 2 : i32
    %c0_i32_102 = arith.constant 0 : i32
    %242 = tpu.memref_slice %arg13[%c2_i32_101, %c0_i32_102] : memref<8x128xf32, #tpu.memory_space<vmem>> -> memref<1x128xf32, #tpu.memory_space<vmem>>
    %243 = tpu.memref_slice %arg15[%c2_i32_98] : memref<8x!tpu.dma_semaphore, #tpu.memory_space<semaphore_mem>> -> memref<1x!tpu.dma_semaphore, #tpu.memory_space<semaphore_mem>>
    %244 = tpu.memref_squeeze %243 : memref<1x!tpu.dma_semaphore, #tpu.memory_space<semaphore_mem>> -> memref<!tpu.dma_semaphore, #tpu.memory_space<semaphore_mem>>
    tpu.wait_dma2 semaphore(%244 : memref<!tpu.dma_semaphore, #tpu.memory_space<semaphore_mem>>) src(%241 : memref<1x128xf32, #tpu.memory_space<any>>) dst(%242 : memref<1x128xf32, #tpu.memory_space<vmem>>)
    %c3_i32_103 = arith.constant 3 : i32
    %c0_i32_104 = arith.constant 0 : i32
    %c0_i32_105 = arith.constant 0 : i32
    %245 = tpu.memref_slice %arg6[%c0_i32_104, %c0_i32_105] : memref<64x128xf32, #tpu.memory_space<any>> -> memref<1x128xf32, #tpu.memory_space<any>>
    %c3_i32_106 = arith.constant 3 : i32
    %c0_i32_107 = arith.constant 0 : i32
    %246 = tpu.memref_slice %arg13[%c3_i32_106, %c0_i32_107] : memref<8x128xf32, #tpu.memory_space<vmem>> -> memref<1x128xf32, #tpu.memory_space<vmem>>
    %247 = tpu.memref_slice %arg15[%c3_i32_103] : memref<8x!tpu.dma_semaphore, #tpu.memory_space<semaphore_mem>> -> memref<1x!tpu.dma_semaphore, #tpu.memory_space<semaphore_mem>>
    %248 = tpu.memref_squeeze %247 : memref<1x!tpu.dma_semaphore, #tpu.memory_space<semaphore_mem>> -> memref<!tpu.dma_semaphore, #tpu.memory_space<semaphore_mem>>
    tpu.wait_dma2 semaphore(%248 : memref<!tpu.dma_semaphore, #tpu.memory_space<semaphore_mem>>) src(%245 : memref<1x128xf32, #tpu.memory_space<any>>) dst(%246 : memref<1x128xf32, #tpu.memory_space<vmem>>)
    %c4_i32_108 = arith.constant 4 : i32
    %c0_i32_109 = arith.constant 0 : i32
    %c0_i32_110 = arith.constant 0 : i32
    %249 = tpu.memref_slice %arg6[%c0_i32_109, %c0_i32_110] : memref<64x128xf32, #tpu.memory_space<any>> -> memref<1x128xf32, #tpu.memory_space<any>>
    %c4_i32_111 = arith.constant 4 : i32
    %c0_i32_112 = arith.constant 0 : i32
    %250 = tpu.memref_slice %arg13[%c4_i32_111, %c0_i32_112] : memref<8x128xf32, #tpu.memory_space<vmem>> -> memref<1x128xf32, #tpu.memory_space<vmem>>
    %251 = tpu.memref_slice %arg15[%c4_i32_108] : memref<8x!tpu.dma_semaphore, #tpu.memory_space<semaphore_mem>> -> memref<1x!tpu.dma_semaphore, #tpu.memory_space<semaphore_mem>>
    %252 = tpu.memref_squeeze %251 : memref<1x!tpu.dma_semaphore, #tpu.memory_space<semaphore_mem>> -> memref<!tpu.dma_semaphore, #tpu.memory_space<semaphore_mem>>
    tpu.wait_dma2 semaphore(%252 : memref<!tpu.dma_semaphore, #tpu.memory_space<semaphore_mem>>) src(%249 : memref<1x128xf32, #tpu.memory_space<any>>) dst(%250 : memref<1x128xf32, #tpu.memory_space<vmem>>)
    %c5_i32_113 = arith.constant 5 : i32
    %c0_i32_114 = arith.constant 0 : i32
    %c0_i32_115 = arith.constant 0 : i32
    %253 = tpu.memref_slice %arg6[%c0_i32_114, %c0_i32_115] : memref<64x128xf32, #tpu.memory_space<any>> -> memref<1x128xf32, #tpu.memory_space<any>>
    %c5_i32_116 = arith.constant 5 : i32
    %c0_i32_117 = arith.constant 0 : i32
    %254 = tpu.memref_slice %arg13[%c5_i32_116, %c0_i32_117] : memref<8x128xf32, #tpu.memory_space<vmem>> -> memref<1x128xf32, #tpu.memory_space<vmem>>
    %255 = tpu.memref_slice %arg15[%c5_i32_113] : memref<8x!tpu.dma_semaphore, #tpu.memory_space<semaphore_mem>> -> memref<1x!tpu.dma_semaphore, #tpu.memory_space<semaphore_mem>>
    %256 = tpu.memref_squeeze %255 : memref<1x!tpu.dma_semaphore, #tpu.memory_space<semaphore_mem>> -> memref<!tpu.dma_semaphore, #tpu.memory_space<semaphore_mem>>
    tpu.wait_dma2 semaphore(%256 : memref<!tpu.dma_semaphore, #tpu.memory_space<semaphore_mem>>) src(%253 : memref<1x128xf32, #tpu.memory_space<any>>) dst(%254 : memref<1x128xf32, #tpu.memory_space<vmem>>)
    %c6_i32_118 = arith.constant 6 : i32
    %c0_i32_119 = arith.constant 0 : i32
    %c0_i32_120 = arith.constant 0 : i32
    %257 = tpu.memref_slice %arg6[%c0_i32_119, %c0_i32_120] : memref<64x128xf32, #tpu.memory_space<any>> -> memref<1x128xf32, #tpu.memory_space<any>>
    %c6_i32_121 = arith.constant 6 : i32
    %c0_i32_122 = arith.constant 0 : i32
    %258 = tpu.memref_slice %arg13[%c6_i32_121, %c0_i32_122] : memref<8x128xf32, #tpu.memory_space<vmem>> -> memref<1x128xf32, #tpu.memory_space<vmem>>
    %259 = tpu.memref_slice %arg15[%c6_i32_118] : memref<8x!tpu.dma_semaphore, #tpu.memory_space<semaphore_mem>> -> memref<1x!tpu.dma_semaphore, #tpu.memory_space<semaphore_mem>>
    %260 = tpu.memref_squeeze %259 : memref<1x!tpu.dma_semaphore, #tpu.memory_space<semaphore_mem>> -> memref<!tpu.dma_semaphore, #tpu.memory_space<semaphore_mem>>
    tpu.wait_dma2 semaphore(%260 : memref<!tpu.dma_semaphore, #tpu.memory_space<semaphore_mem>>) src(%257 : memref<1x128xf32, #tpu.memory_space<any>>) dst(%258 : memref<1x128xf32, #tpu.memory_space<vmem>>)
    %c7_i32_123 = arith.constant 7 : i32
    %c0_i32_124 = arith.constant 0 : i32
    %c0_i32_125 = arith.constant 0 : i32
    %261 = tpu.memref_slice %arg6[%c0_i32_124, %c0_i32_125] : memref<64x128xf32, #tpu.memory_space<any>> -> memref<1x128xf32, #tpu.memory_space<any>>
    %c7_i32_126 = arith.constant 7 : i32
    %c0_i32_127 = arith.constant 0 : i32
    %262 = tpu.memref_slice %arg13[%c7_i32_126, %c0_i32_127] : memref<8x128xf32, #tpu.memory_space<vmem>> -> memref<1x128xf32, #tpu.memory_space<vmem>>
    %263 = tpu.memref_slice %arg15[%c7_i32_123] : memref<8x!tpu.dma_semaphore, #tpu.memory_space<semaphore_mem>> -> memref<1x!tpu.dma_semaphore, #tpu.memory_space<semaphore_mem>>
    %264 = tpu.memref_squeeze %263 : memref<1x!tpu.dma_semaphore, #tpu.memory_space<semaphore_mem>> -> memref<!tpu.dma_semaphore, #tpu.memory_space<semaphore_mem>>
    tpu.wait_dma2 semaphore(%264 : memref<!tpu.dma_semaphore, #tpu.memory_space<semaphore_mem>>) src(%261 : memref<1x128xf32, #tpu.memory_space<any>>) dst(%262 : memref<1x128xf32, #tpu.memory_space<vmem>>)
    %c0_128 = arith.constant 0 : index
    %c0_129 = arith.constant 0 : index
    %265 = vector.load %arg13[%c0_128, %c0_129] : memref<8x128xf32, #tpu.memory_space<vmem>>, vector<8x128xf32>
    %c0_130 = arith.constant 0 : index
    %c0_131 = arith.constant 0 : index
    %266 = vector.load %arg14[%c0_130, %c0_131] : memref<8x128xf32, #tpu.memory_space<vmem>>, vector<8x128xf32>
    %267 = arith.addf %265, %266 : vector<8x128xf32>
    %cst = arith.constant dense<0.000000e+00> : vector<8xf32>
    %268 = vector.multi_reduction <add>, %267, %cst [1] : vector<8x128xf32> to vector<8xf32>
    %269 = vector.shape_cast %268 : vector<8xf32> to vector<8x1xf32>
    %cst_132 = arith.constant 7.812500e-03 : f32
    %270 = vector.broadcast %cst_132 : f32 to vector<8x1xf32>
    %271 = arith.mulf %269, %270 : vector<8x1xf32>
    %272 = arith.mulf %267, %267 : vector<8x128xf32>
    %cst_133 = arith.constant dense<0.000000e+00> : vector<8xf32>
    %273 = vector.multi_reduction <add>, %272, %cst_133 [1] : vector<8x128xf32> to vector<8xf32>
    %274 = vector.shape_cast %273 : vector<8xf32> to vector<8x1xf32>
    %cst_134 = arith.constant 7.812500e-03 : f32
    %275 = vector.broadcast %cst_134 : f32 to vector<8x1xf32>
    %276 = arith.mulf %274, %275 : vector<8x1xf32>
    %277 = arith.mulf %271, %271 : vector<8x1xf32>
    %278 = arith.subf %276, %277 : vector<8x1xf32>
    %cst_135 = arith.constant 9.99999996E-13 : f32
    %279 = vector.broadcast %cst_135 : f32 to vector<8x1xf32>
    %280 = arith.addf %278, %279 : vector<8x1xf32>
    %281 = math.rsqrt %280 : vector<8x1xf32>
    %282 = vector.broadcast %271 : vector<8x1xf32> to vector<8x128xf32>
    %283 = arith.subf %267, %282 : vector<8x128xf32>
    %284 = vector.broadcast %281 : vector<8x1xf32> to vector<8x128xf32>
    %285 = arith.mulf %283, %284 : vector<8x128xf32>
    %c0_136 = arith.constant 0 : index
    %c0_137 = arith.constant 0 : index
    %286 = vector.load %arg10[%c0_136, %c0_137] : memref<1x128xf32, #tpu.memory_space<vmem>>, vector<1x128xf32>
    %287 = vector.broadcast %286 : vector<1x128xf32> to vector<8x128xf32>
    %288 = arith.mulf %285, %287 : vector<8x128xf32>
    %c0_138 = arith.constant 0 : index
    %c0_139 = arith.constant 0 : index
    %289 = vector.load %arg11[%c0_138, %c0_139] : memref<1x128xf32, #tpu.memory_space<vmem>>, vector<1x128xf32>
    %290 = vector.broadcast %289 : vector<1x128xf32> to vector<8x128xf32>
    %291 = arith.addf %288, %290 : vector<8x128xf32>
    %c0_140 = arith.constant 0 : index
    %c0_141 = arith.constant 0 : index
    %c0_142 = arith.constant 0 : index
    %292 = vector.load %arg12[%c0_140, %c0_141, %c0_142] : memref<1x8x128xf32, #tpu.memory_space<vmem>>, vector<1x8x128xf32>
    %293 = vector.shape_cast %292 : vector<1x8x128xf32> to vector<8x128xf32>
    %294 = vector.shape_cast %291 : vector<8x128xf32> to vector<1x8x128xf32>
    tpu.vector_store %arg12[%c0_140, %c0_141, %c0_142], %294 {strides = array<i32>} : memref<1x8x128xf32, #tpu.memory_space<vmem>>, vector<1x8x128xf32>,
    return
  }
  func.func @transform_1(%arg0: i32, %arg1: i32, %arg2: memref<2x8xi32, #tpu.memory_space<smem>>, %arg3: memref<2x8xi32, #tpu.memory_space<smem>>, %arg4: memref<2x8xi32, #tpu.memory_space<smem>>, %arg5: memref<2x8xi32, #tpu.memory_space<smem>>) -> (i32, i32) {
    %c0_i32 = arith.constant 0 : i32
    %c0_i32_0 = arith.constant 0 : i32
    %c0_i32_1 = arith.constant 0 : i32
    return %c0_i32, %c0_i32_0 : i32, i32
  }
  func.func @transform_2(%arg0: i32, %arg1: i32, %arg2: memref<2x8xi32, #tpu.memory_space<smem>>, %arg3: memref<2x8xi32, #tpu.memory_space<smem>>, %arg4: memref<2x8xi32, #tpu.memory_space<smem>>, %arg5: memref<2x8xi32, #tpu.memory_space<smem>>) -> (i32, i32) {
    %c0_i32 = arith.constant 0 : i32
    %c0_i32_0 = arith.constant 0 : i32
    %c0_i32_1 = arith.constant 0 : i32
    return %c0_i32, %c0_i32_0 : i32, i32
  }
  func.func @transform_3(%arg0: i32, %arg1: i32, %arg2: memref<2x8xi32, #tpu.memory_space<smem>>, %arg3: memref<2x8xi32, #tpu.memory_space<smem>>, %arg4: memref<2x8xi32, #tpu.memory_space<smem>>, %arg5: memref<2x8xi32, #tpu.memory_space<smem>>) -> (i32, i32) {
    %c0_i32 = arith.constant 0 : i32
    %c0_i32_0 = arith.constant 0 : i32
    %c0_i32_1 = arith.constant 0 : i32
    return %c0_i32, %c0_i32_0 : i32, i32
  }
  func.func @transform_4(%arg0: i32, %arg1: i32, %arg2: memref<2x8xi32, #tpu.memory_space<smem>>, %arg3: memref<2x8xi32, #tpu.memory_space<smem>>, %arg4: memref<2x8xi32, #tpu.memory_space<smem>>, %arg5: memref<2x8xi32, #tpu.memory_space<smem>>) -> (i32, i32) {
    %c0_i32 = arith.constant 0 : i32
    %c0_i32_0 = arith.constant 0 : i32
    %c0_i32_1 = arith.constant 0 : i32
    return %c0_i32, %c0_i32_0 : i32, i32
  }
  func.func @transform_5(%arg0: i32, %arg1: i32, %arg2: memref<2x8xi32, #tpu.memory_space<smem>>, %arg3: memref<2x8xi32, #tpu.memory_space<smem>>, %arg4: memref<2x8xi32, #tpu.memory_space<smem>>, %arg5: memref<2x8xi32, #tpu.memory_space<smem>>) -> (i32, i32) {
    %c0_i32 = arith.constant 0 : i32
    %c0_i32_0 = arith.constant 0 : i32
    %c0_i32_1 = arith.constant 0 : i32
    return %c0_i32, %c0_i32_0 : i32, i32
  }
  func.func @transform_6(%arg0: i32, %arg1: i32, %arg2: memref<2x8xi32, #tpu.memory_space<smem>>, %arg3: memref<2x8xi32, #tpu.memory_space<smem>>, %arg4: memref<2x8xi32, #tpu.memory_space<smem>>, %arg5: memref<2x8xi32, #tpu.memory_space<smem>>) -> (i32, i32, i32) {
    %c0_i32 = arith.constant 0 : i32
    %c0_i32_0 = arith.constant 0 : i32
    return %arg0, %arg1, %c0_i32 : i32, i32, i32
  }
}

</mosaic_0001>

<llo_original>
// kernel: tpu_custom_call.1
$region0: #{tpu_custom_call.1}
  #allocation0 [shape = 'u32[]', space=smem, size = 0x4, offset = 0x4, fixed_abs, tag = 'smem constant byte address 0x4 - core index']
  #allocation1 [shape = 'u32[144,128]{1,0:T(1,128)}', space=vmem, size = 0x12000, scoped, tag = 'internal scratch']
  #allocation2 [shape = 'f32[8,128]{1,0:T(8,128)}', space=vmem, size = 0x1000, scoped, tag = 'scratch operand']
  #allocation3 [shape = 'f32[8,128]{1,0:T(8,128)}', space=vmem, size = 0x1000, scoped, tag = 'scratch operand']
  #allocation4 [shape = 's32[8]{0}', space=sflag, size = 0x20, scoped, tag = 'scratch operand']
  #allocation5 [shape = 's32[1]{0}', space=sflag, size = 0x4, scoped, tag = 'scoped memory for tpu_custom_call.1']
  #allocation6 [shape = 'u8[1024]{0}', space=smem, size = 0x400, scoped, tag = 'prefetched SMEM operand 0']
  #allocation7 [shape = 'u8[1024]{0}', space=smem, size = 0x400, scoped, tag = 'prefetched SMEM operand 1']
  #allocation8 [shape = 'u8[1024]{0}', space=smem, size = 0x400, scoped, tag = 'prefetched SMEM operand 2']
  #allocation9 [shape = 'u8[1024]{0}', space=smem, size = 0x400, scoped, tag = 'prefetched SMEM operand 3']
  #allocation14 [shape = 's32[]', space=sflag, size = 0x4, offset = 0, fixed_abs, tag = 'sflag constant byte address 0x0 - dummy sync flag']
  #allocation15 [shape = 's32[]', space=sflag, size = 0x4, offset = 0, fixed_abs, tag = 'sflag constant byte address 0x0 - dummy sync flag']
  #allocation16 [shape = 'u32[]', space=smem, size = 0x4, offset = 0x44, fixed_abs, tag = 'smem constant byte address 0x44 - assertion arg 0']
  #allocation17 [shape = 'u32[]', space=smem, size = 0x4, offset = 0x48, fixed_abs, tag = 'smem constant byte address 0x48 - assertion arg 1']
  #allocation18 [shape = 's32[]', space=sflag, size = 0x4, offset = 0, fixed_abs, tag = 'sflag constant byte address 0x0 - dummy sync flag']
  #allocation19 [shape = 's32[]', space=sflag, size = 0x4, offset = 0, fixed_abs, tag = 'sflag constant byte address 0x0 - dummy sync flag']
  #allocation20 [shape = 's32[]', space=sflag, size = 0x4, offset = 0, fixed_abs, tag = 'sflag constant byte address 0x0 - dummy sync flag']
  #allocation21 [shape = 's32[]', space=sflag, size = 0x4, offset = 0, fixed_abs, tag = 'sflag constant byte address 0x0 - dummy sync flag']
  #allocation22 [shape = 's32[]', space=sflag, size = 0x4, offset = 0, fixed_abs, tag = 'sflag constant byte address 0x0 - dummy sync flag']
  #allocation23 [shape = 's32[]', space=sflag, size = 0x4, offset = 0, fixed_abs, tag = 'sflag constant byte address 0x0 - dummy sync flag']
  #allocation24 [shape = 's32[]', space=sflag, size = 0x4, offset = 0, fixed_abs, tag = 'sflag constant byte address 0x0 - dummy sync flag']
  #allocation25 [shape = 's32[]', space=sflag, size = 0x4, offset = 0, fixed_abs, tag = 'sflag constant byte address 0x0 - dummy sync flag']
  #allocation26 [shape = 's32[]', space=sflag, size = 0x4, offset = 0, fixed_abs, tag = 'sflag constant byte address 0x0 - dummy sync flag']
  #allocation27 [shape = 's32[]', space=sflag, size = 0x4, offset = 0, fixed_abs, tag = 'sflag constant byte address 0x0 - dummy sync flag']
  #allocation28 [shape = 's32[]', space=sflag, size = 0x4, offset = 0, fixed_abs, tag = 'sflag constant byte address 0x0 - dummy sync flag']
  #allocation29 [shape = 's32[]', space=sflag, size = 0x4, offset = 0, fixed_abs, tag = 'sflag constant byte address 0x0 - dummy sync flag']
  #allocation30 [shape = 's32[]', space=sflag, size = 0x4, offset = 0, fixed_abs, tag = 'sflag constant byte address 0x0 - dummy sync flag']
  #allocation31 [shape = 's32[]', space=sflag, size = 0x4, offset = 0, fixed_abs, tag = 'sflag constant byte address 0x0 - dummy sync flag']
  %s0 = inlined_call_operand.hbm [shape: s32[2,8], index: 0, kind: input, shape index: {}]
  %s1 = inlined_call_operand.hbm [shape: s32[2,8], index: 1, kind: input, shape index: {}]
  %s2 = inlined_call_operand.vmem [shape: s32[2,8], index: 2, kind: input, shape index: {}]
  %s3 = inlined_call_operand.hbm [shape: s32[2,8], index: 3, kind: input, shape index: {}]
  %s4 = inlined_call_operand.hbm [shape: f32[64,128], index: 4, kind: input, shape index: {}]
  %s5 = inlined_call_operand.hbm [shape: f32[32,128], index: 5, kind: input, shape index: {}]
  %s6 = inlined_call_operand.vmem [shape: f32[2,128], index: 6, kind: input, shape index: {}]
  %s7 = inlined_call_operand.vmem [shape: f32[4,128], index: 7, kind: input, shape index: {}]
  %s8 = inlined_call_operand.vmem [shape: f32[1,128], index: 8, kind: input, shape index: {}]
  %s9 = inlined_call_operand.vmem [shape: f32[1,128], index: 9, kind: input, shape index: {}]
  %s10 = inlined_call_operand.hbm [shape: f32[2,8,128], index: 10, kind: output, shape index: {}]
  %s11 = sld [smem:[#allocation0]]
  $region89: #{tpu_custom_call.1} parent=0
    _
  %s13 = ssub.s32 1, %s11
  %s14 = scalar_select 0, %s13, %s11
  %16 = dma.hbm_to_smem %s0, 32, [#allocation6], [#allocation5]
  %18 = dma.hbm_to_smem %s1, 32, [#allocation7], [#allocation5]
  %s19 = sshll.u32 %s2, 4
  %s20 = int_to_ptr.vmem [resolvable:$true] %s19
  %22 = dma.vmem_to_smem %s20, 32, [#allocation8], [#allocation5]
  %24 = dma.hbm_to_smem %s3, 32, [#allocation9], [#allocation5]
  %25 = dma.done [#allocation5], 128
  %26 = sfence
  $region1: #{tpu_custom_call.1} parent=0
    #allocation10 [shape = 'u8[16384]{0}', space=vmem, size = 0x4000, scoped, tag = 'input window, operand 5, single buffered']
    #allocation11 [shape = 's32[2]{0}', space=sflag, size = 0x8, scoped, tag = 'scoped memory for tpu_custom_call.1']
    #allocation12 [shape = 's32[2]{0}', space=sflag, size = 0x8, scoped, tag = 'scoped memory for tpu_custom_call.1']
    #allocation13 [shape = 'u8[8192]{0}', space=vmem, size = 0x2000, scoped, tag = 'output window, operand 0']
    %27 = vsyncpa [#allocation11], 0
    %28 = vsyncpa [#allocation12], 0
    %s29 = scalar_lea.sflag [#allocation12], 1
    %30 = vsyncpa %s29, 0
    loop: start=0, step=1, limit=4
    $region2: #{tpu_custom_call.1} parent=1 // loop_pre_header
      _
    $region3: #{tpu_custom_call.1} parent=1 // loop_header
      %s32 = sphi 0, %s36
      %p33 = scmp.ge.s32.totalorder %s32, 4
      %s39 = sphi 0, %s51
      %s40 = sphi 0, %s47
      %s41 = sphi 0, %s39
      %s42 = sphi 0, %s40
      %s43 = sphi 0, %s41
      %s44 = sphi 0, %s42
      %s52 = sphi 0, %s52
      %s54 = sphi 0, %s52
      %s55 = sphi 0, %s54
      %s69 = sphi 0, %s55
      %s73 = sphi 0, %s73
      %s75 = sphi 0, %s73
      %s76 = sphi 0, %s75
      %s90 = sphi 0, %s76
      %s94 = sphi 0, %s94
      %s96 = sphi 0, %s94
      %s97 = sphi 0, %s96
      %s111 = sphi 0, %s97
      %s115 = sphi 0, %s115
      %s117 = sphi 0, %s115
      %s118 = sphi 0, %s117
      %s132 = sphi 0, %s118
      %s136 = sphi 0, %s136
      %s138 = sphi 0, %s136
      %s139 = sphi 0, %s138
      %s153 = sphi 0, %s139
      %s161 = sphi 0, %s163
      %s164 = sphi 0, %s161
      %s165 = sphi 0, %s164
      %s181 = sphi 0, %s165
    $region4: #{tpu_custom_call.1} parent=1 // loop_header_branch
      %35 = sbr.rel (%p33) target = $region8
    $region5: #{tpu_custom_call.1} parent=1 // loop_body
      %s37 = ssub.s32 %s32, 1
      %s38 = ssub.s32 %s32, 2
      %s45 = sadd.s32 1, %s40
      %p46 = scmp.ge.s32.totalorder %s45, 1
      %s47 = scalar_select %p46, 0, %s45
      %s48 = sadd.s32 1, %s39
      %s49 = scalar_select %p46, %s48, %s39
      %p50 = scmp.ge.s32.totalorder %s49, 2
      %s51 = scalar_select %p50, 0, %s49
      %s53 = sadd.s32 %s52, 1
      %p56 = scmp.eq.s32.totalorder %s32, 1
      %p57 = scmp.ne.s32.totalorder %s52, %s54
      %p58 = scmp.eq.s32.totalorder %s32, 0
      %p59 = por %p57, %p58
      %p60 = scmp.ne.s32.totalorder %s52, %s54
      %p61 = scmp.eq.s32.totalorder %s37, 1
      %p62 = por %p60, %p61
      %p63 = scmp.ne.s32.totalorder %s54, %s55
      %p64 = scmp.eq.s32.totalorder %s37, 0
      %p65 = por %p63, %p64
      %p66 = scmp.ne.s32.totalorder %s54, %s55
      %p67 = scmp.eq.s32.totalorder %s38, 1
      %p68 = por %p66, %p67
      %p70 = scmp.ne.s32.totalorder %s55, %s69
      %p71 = scmp.eq.s32.totalorder %s38, 0
      %p72 = por %p70, %p71
      %s74 = sadd.s32 %s73, 1
      %p77 = scmp.eq.s32.totalorder %s32, 1
      %p78 = scmp.ne.s32.totalorder %s73, %s75
      %p79 = scmp.eq.s32.totalorder %s32, 0
      %p80 = por %p78, %p79
      %p81 = scmp.ne.s32.totalorder %s73, %s75
      %p82 = scmp.eq.s32.totalorder %s37, 1
      %p83 = por %p81, %p82
      %p84 = scmp.ne.s32.totalorder %s75, %s76
      %p85 = scmp.eq.s32.totalorder %s37, 0
      %p86 = por %p84, %p85
      %p87 = scmp.ne.s32.totalorder %s75, %s76
      %p88 = scmp.eq.s32.totalorder %s38, 1
      %p89 = por %p87, %p88
      %p91 = scmp.ne.s32.totalorder %s76, %s90
      %p92 = scmp.eq.s32.totalorder %s38, 0
      %p93 = por %p91, %p92
      %s95 = sadd.s32 %s94, 1
      %p98 = scmp.eq.s32.totalorder %s32, 1
      %p99 = scmp.ne.s32.totalorder %s94, %s96
      %p100 = scmp.eq.s32.totalorder %s32, 0
      %p101 = por %p99, %p100
      %p102 = scmp.ne.s32.totalorder %s94, %s96
      %p103 = scmp.eq.s32.totalorder %s37, 1
      %p104 = por %p102, %p103
      %p105 = scmp.ne.s32.totalorder %s96, %s97
      %p106 = scmp.eq.s32.totalorder %s37, 0
      %p107 = por %p105, %p106
      %p108 = scmp.ne.s32.totalorder %s96, %s97
      %p109 = scmp.eq.s32.totalorder %s38, 1
      %p110 = por %p108, %p109
      %p112 = scmp.ne.s32.totalorder %s97, %s111
      %p113 = scmp.eq.s32.totalorder %s38, 0
      %p114 = por %p112, %p113
      %s116 = sadd.s32 %s115, 1
      %p119 = scmp.eq.s32.totalorder %s32, 1
      %p120 = scmp.ne.s32.totalorder %s115, %s117
      %p121 = scmp.eq.s32.totalorder %s32, 0
      %p122 = por %p120, %p121
      %p123 = scmp.ne.s32.totalorder %s115, %s117
      %p124 = scmp.eq.s32.totalorder %s37, 1
      %p125 = por %p123, %p124
      %p126 = scmp.ne.s32.totalorder %s117, %s118
      %p127 = scmp.eq.s32.totalorder %s37, 0
      %p128 = por %p126, %p127
      %p129 = scmp.ne.s32.totalorder %s117, %s118
      %p130 = scmp.eq.s32.totalorder %s38, 1
      %p131 = por %p129, %p130
      %p133 = scmp.ne.s32.totalorder %s118, %s132
      %p134 = scmp.eq.s32.totalorder %s38, 0
      %p135 = por %p133, %p134
      %s137 = sadd.s32 %s136, 1
      %p140 = scmp.eq.s32.totalorder %s32, 1
      %p141 = scmp.ne.s32.totalorder %s136, %s138
      %p142 = scmp.eq.s32.totalorder %s32, 0
      %p143 = por %p141, %p142
      %p144 = scmp.ne.s32.totalorder %s136, %s138
      %p145 = scmp.eq.s32.totalorder %s37, 1
      %p146 = por %p144, %p145
      %p147 = scmp.ne.s32.totalorder %s138, %s139
      %p148 = scmp.eq.s32.totalorder %s37, 0
      %p149 = por %p147, %p148
      %p150 = scmp.ne.s32.totalorder %s138, %s139
      %p151 = scmp.eq.s32.totalorder %s38, 1
      %p152 = por %p150, %p151
      %p154 = scmp.ne.s32.totalorder %s139, %s153
      %p155 = scmp.eq.s32.totalorder %s38, 0
      %p156 = por %p154, %p155
      %s157 = ssub.s32 %s39, %s51
      %s158 = ssub.s32 %s40, %s47
      %s159 = sor.u32 %s157, %s158
      %p160 = scmp.eq.s32.totalorder %s159, 0
      %s162 = sadd.s32 %s161, 1
      %s163 = scalar_select %p160, %s161, %s162
      %p166 = pneg %p160
      %p167 = scmp.eq.s32.totalorder %s32, 1
      %p168 = por %p166, %p167
      %p169 = scmp.ne.s32.totalorder %s161, %s164
      %p170 = scmp.eq.s32.totalorder %s32, 0
      %p171 = por %p169, %p170
      %p172 = scmp.ne.s32.totalorder %s161, %s164
      %p173 = scmp.eq.s32.totalorder %s37, 1
      %p174 = por %p172, %p173
      %p175 = scmp.ne.s32.totalorder %s164, %s165
      %p176 = scmp.eq.s32.totalorder %s37, 0
      %p177 = por %p175, %p176
      %p178 = scmp.ne.s32.totalorder %s164, %s165
      %p179 = scmp.eq.s32.totalorder %s38, 1
      %p180 = por %p178, %p179
      %p182 = scmp.ne.s32.totalorder %s165, %s181
      %p183 = scmp.eq.s32.totalorder %s38, 0
      %p184 = por %p182, %p183
      %p185 = scmp.le.s32.totalorder 1, %s32
      %p186 = scmp.lt.s32.totalorder %s32, 3
      %p187 = pnand %p185, %p186
      %p188 = pneg %p187
      // Predicated region
      $region9: #{tpu_custom_call.1} parent=5 // pred_check
        _
      $region10: #{tpu_custom_call.1} parent=5 // pred_check_branch
        %190 = sbr.rel (%p187) target = $region12
      $region11: #{tpu_custom_call.1} parent=5 // pred_region
        %s191 = ssub.s32 %s32, 1
        // Predicated region
        $region13: #{tpu_custom_call.1} parent=11 // pred_check
          %p192 = pneg %p65
        $region14: #{tpu_custom_call.1} parent=11 // pred_check_branch
          %194 = sbr.rel (%p192) target = $region16
        $region15: #{tpu_custom_call.1} parent=11 // pred_region
          %s196 = ssub.s32 512, 512
          %197 = vsyncadd [#allocation11], %s196
          %s198 = sshll.u32 [#allocation10], 4
          %s199 = int_to_ptr.vmem [resolvable:$true] %s198
          %204 = dma.hbm_to_vmem [thread:$0]  %s5, 512, %s199, [#allocation11], 128, 128, 8
        $region16: #{tpu_custom_call.1} parent=11 // pred_fallthru
          _
        // Predicated region
        $region17: #{tpu_custom_call.1} parent=11 // pred_check
          %p205 = pneg %p86
        $region18: #{tpu_custom_call.1} parent=11 // pred_check_branch
          %207 = sbr.rel (%p205) target = $region20
        $region19: #{tpu_custom_call.1} parent=11 // pred_region
          _
        $region20: #{tpu_custom_call.1} parent=11 // pred_fallthru
          _
        // Predicated region
        $region21: #{tpu_custom_call.1} parent=11 // pred_check
          %p208 = pneg %p107
        $region22: #{tpu_custom_call.1} parent=11 // pred_check_branch
          %210 = sbr.rel (%p208) target = $region24
        $region23: #{tpu_custom_call.1} parent=11 // pred_region
          _
        $region24: #{tpu_custom_call.1} parent=11 // pred_fallthru
          _
        // Predicated region
        $region25: #{tpu_custom_call.1} parent=11 // pred_check
          %p211 = pneg %p128
        $region26: #{tpu_custom_call.1} parent=11 // pred_check_branch
          %213 = sbr.rel (%p211) target = $region28
        $region27: #{tpu_custom_call.1} parent=11 // pred_region
          _
        $region28: #{tpu_custom_call.1} parent=11 // pred_fallthru
          _
        // Predicated region
        $region29: #{tpu_custom_call.1} parent=11 // pred_check
          %p214 = pneg %p149
        $region30: #{tpu_custom_call.1} parent=11 // pred_check_branch
          %216 = sbr.rel (%p214) target = $region32
        $region31: #{tpu_custom_call.1} parent=11 // pred_region
          _
        $region32: #{tpu_custom_call.1} parent=11 // pred_fallthru
          _
      $region12: #{tpu_custom_call.1} parent=5 // pred_fallthru
        _
      %p217 = scmp.lt.s32.totalorder %s32, 2
      // Predicated region
      $region33: #{tpu_custom_call.1} parent=5 // pred_check
        %p218 = pneg %p217
      $region34: #{tpu_custom_call.1} parent=5 // pred_check_branch
        %220 = sbr.rel (%p218) target = $region36
      $region35: #{tpu_custom_call.1} parent=5 // pred_region
        _
      $region36: #{tpu_custom_call.1} parent=5 // pred_fallthru
        _
      %p221 = scmp.le.s32.totalorder 1, %s32
      %p222 = scmp.lt.s32.totalorder %s32, 3
      %p223 = pnand %p221, %p222
      %p224 = pneg %p223
      // Predicated region
      $region37: #{tpu_custom_call.1} parent=5 // pred_check
        _
      $region38: #{tpu_custom_call.1} parent=5 // pred_check_branch
        %226 = sbr.rel (%p223) target = $region40
      $region39: #{tpu_custom_call.1} parent=5 // pred_region
        %s227 = ssub.s32 %s32, 1
        // Predicated region
        $region41: #{tpu_custom_call.1} parent=39 // pred_check
          %p228 = pneg %p65
        $region42: #{tpu_custom_call.1} parent=39 // pred_check_branch
          %230 = sbr.rel (%p228) target = $region44
        $region43: #{tpu_custom_call.1} parent=39 // pred_region
          %231 = dma.done [#allocation11], 512
        $region44: #{tpu_custom_call.1} parent=39 // pred_fallthru
          _
        %p232 = pneg %p65
        %p233 = pneg %p62
        %p234 = pneg %p86
        %p235 = pneg %p83
        %p236 = pneg %p107
        %p237 = pneg %p104
        %p238 = pneg %p128
        %p239 = pneg %p125
        %p240 = pneg %p149
        %p241 = pneg %p146
        %p242 = pneg %p177
        %p243 = pneg %p174
        %s244 = sand.u32 %s164, 1
        %s245 = scalar_lea.sflag [#allocation12], %s244
        %s246 = sand.u32 %s164, 1
        %s247 = smul.addr %s246, 8
        %s248 = scalar_lea.vmem [#allocation13], %s247
        %s249 = smul.u32 %s42, 8
        %s250 = sshra.s32 %s249, 7
        %s251 = sand.u32 %s249, 127
        %s252 = sadd.s32 %s250, %s41
        %s253 = smul.u32 %s252, 128
        %s254 = sshra.s32 %s249, 7
        %s255 = sand.u32 %s249, 127
        %s256 = sadd.s32 %s253, %s255
        %s257 = sld [smem:[#allocation6 + %s256]]
        %s258 = smul.addr %s257, 16
        %s259 = scalar_lea.hbm %s4, %s258
        // Predicated region
        $region45: #{tpu_custom_call.1} parent=39 // pred_check
          _
        $region46: #{tpu_custom_call.1} parent=39 // pred_check_branch
          %261 = sbr.rel target = $region48
        $region47: #{tpu_custom_call.1} parent=39 // pred_region
          %262 = sst [smem:[#allocation16]] [#allocation15]
          %263 = sst [smem:[#allocation17]] [#allocation14]
        $region48: #{tpu_custom_call.1} parent=39 // pred_fallthru
          _
        %265 = shalt.err (0)
        %s267 = sshll.u32 [#allocation2], 4
        %s268 = int_to_ptr.vmem [resolvable:$true] %s267
        %270 = dma.hbm_to_vmem [thread:$0]  %s259, 16, %s268, [#allocation4]
        %s271 = sadd.s32 %s249, 1
        %s272 = sshra.s32 %s271, 7
        %s273 = sand.u32 %s271, 127
        %s274 = sadd.s32 %s272, %s41
        %s275 = smul.u32 %s274, 128
        %s276 = sshra.s32 %s271, 7
        %s277 = sand.u32 %s271, 127
        %s278 = sadd.s32 %s275, %s277
        %s279 = sld [smem:[#allocation6 + %s278]]
        %s280 = smul.addr %s279, 16
        %s281 = scalar_lea.hbm %s4, %s280
        %s282 = scalar_lea.vmem [#allocation2], 1
        %s283 = scalar_lea.sflag [#allocation4], 1
        // Predicated region
        $region49: #{tpu_custom_call.1} parent=39 // pred_check
          _
        $region50: #{tpu_custom_call.1} parent=39 // pred_check_branch
          %285 = sbr.rel target = $region52
        $region51: #{tpu_custom_call.1} parent=39 // pred_region
          %286 = sst [smem:[#allocation16]] [#allocation19]
          %287 = sst [smem:[#allocation17]] [#allocation18]
        $region52: #{tpu_custom_call.1} parent=39 // pred_fallthru
          _
        %289 = shalt.err (0)
        %s291 = sshll.u32 %s282, 4
        %s292 = int_to_ptr.vmem [resolvable:$true] %s291
        %294 = dma.hbm_to_vmem [thread:$0]  %s281, 16, %s292, %s283
        %s295 = sadd.s32 %s249, 2
        %s296 = sshra.s32 %s295, 7
        %s297 = sand.u32 %s295, 127
        %s298 = sadd.s32 %s296, %s41
        %s299 = smul.u32 %s298, 128
        %s300 = sshra.s32 %s295, 7
        %s301 = sand.u32 %s295, 127
        %s302 = sadd.s32 %s299, %s301
        %s303 = sld [smem:[#allocation6 + %s302]]
        %s304 = smul.addr %s303, 16
        %s305 = scalar_lea.hbm %s4, %s304
        %s306 = scalar_lea.vmem [#allocation2], 2
        %s307 = scalar_lea.sflag [#allocation4], 2
        // Predicated region
        $region53: #{tpu_custom_call.1} parent=39 // pred_check
          _
        $region54: #{tpu_custom_call.1} parent=39 // pred_check_branch
          %309 = sbr.rel target = $region56
        $region55: #{tpu_custom_call.1} parent=39 // pred_region
          %310 = sst [smem:[#allocation16]] [#allocation21]
          %311 = sst [smem:[#allocation17]] [#allocation20]
        $region56: #{tpu_custom_call.1} parent=39 // pred_fallthru
          _
        %313 = shalt.err (0)
        %s315 = sshll.u32 %s306, 4
        %s316 = int_to_ptr.vmem [resolvable:$true] %s315
        %318 = dma.hbm_to_vmem [thread:$0]  %s305, 16, %s316, %s307
        %s319 = sadd.s32 %s249, 3
        %s320 = sshra.s32 %s319, 7
        %s321 = sand.u32 %s319, 127
        %s322 = sadd.s32 %s320, %s41
        %s323 = smul.u32 %s322, 128
        %s324 = sshra.s32 %s319, 7
        %s325 = sand.u32 %s319, 127
        %s326 = sadd.s32 %s323, %s325
        %s327 = sld [smem:[#allocation6 + %s326]]
        %s328 = smul.addr %s327, 16
        %s329 = scalar_lea.hbm %s4, %s328
        %s330 = scalar_lea.vmem [#allocation2], 3
        %s331 = scalar_lea.sflag [#allocation4], 3
        // Predicated region
        $region57: #{tpu_custom_call.1} parent=39 // pred_check
          _
        $region58: #{tpu_custom_call.1} parent=39 // pred_check_branch
          %333 = sbr.rel target = $region60
        $region59: #{tpu_custom_call.1} parent=39 // pred_region
          %334 = sst [smem:[#allocation16]] [#allocation23]
          %335 = sst [smem:[#allocation17]] [#allocation22]
        $region60: #{tpu_custom_call.1} parent=39 // pred_fallthru
          _
        %337 = shalt.err (0)
        %s339 = sshll.u32 %s330, 4
        %s340 = int_to_ptr.vmem [resolvable:$true] %s339
        %342 = dma.hbm_to_vmem [thread:$0]  %s329, 16, %s340, %s331
        %s343 = sadd.s32 %s249, 4
        %s344 = sshra.s32 %s343, 7
        %s345 = sand.u32 %s343, 127
        %s346 = sadd.s32 %s344, %s41
        %s347 = smul.u32 %s346, 128
        %s348 = sshra.s32 %s343, 7
        %s349 = sand.u32 %s343, 127
        %s350 = sadd.s32 %s347, %s349
        %s351 = sld [smem:[#allocation6 + %s350]]
        %s352 = smul.addr %s351, 16
        %s353 = scalar_lea.hbm %s4, %s352
        %s354 = scalar_lea.vmem [#allocation2], 4
        %s355 = scalar_lea.sflag [#allocation4], 4
        // Predicated region
        $region61: #{tpu_custom_call.1} parent=39 // pred_check
          _
        $region62: #{tpu_custom_call.1} parent=39 // pred_check_branch
          %357 = sbr.rel target = $region64
        $region63: #{tpu_custom_call.1} parent=39 // pred_region
          %358 = sst [smem:[#allocation16]] [#allocation25]
          %359 = sst [smem:[#allocation17]] [#allocation24]
        $region64: #{tpu_custom_call.1} parent=39 // pred_fallthru
          _
        %361 = shalt.err (0)
        %s363 = sshll.u32 %s354, 4
        %s364 = int_to_ptr.vmem [resolvable:$true] %s363
        %366 = dma.hbm_to_vmem [thread:$0]  %s353, 16, %s364, %s355
        %s367 = sadd.s32 %s249, 5
        %s368 = sshra.s32 %s367, 7
        %s369 = sand.u32 %s367, 127
        %s370 = sadd.s32 %s368, %s41
        %s371 = smul.u32 %s370, 128
        %s372 = sshra.s32 %s367, 7
        %s373 = sand.u32 %s367, 127
        %s374 = sadd.s32 %s371, %s373
        %s375 = sld [smem:[#allocation6 + %s374]]
        %s376 = smul.addr %s375, 16
        %s377 = scalar_lea.hbm %s4, %s376
        %s378 = scalar_lea.vmem [#allocation2], 5
        %s379 = scalar_lea.sflag [#allocation4], 5
        // Predicated region
        $region65: #{tpu_custom_call.1} parent=39 // pred_check
          _
        $region66: #{tpu_custom_call.1} parent=39 // pred_check_branch
          %381 = sbr.rel target = $region68
        $region67: #{tpu_custom_call.1} parent=39 // pred_region
          %382 = sst [smem:[#allocation16]] [#allocation27]
          %383 = sst [smem:[#allocation17]] [#allocation26]
        $region68: #{tpu_custom_call.1} parent=39 // pred_fallthru
          _
        %385 = shalt.err (0)
        %s387 = sshll.u32 %s378, 4
        %s388 = int_to_ptr.vmem [resolvable:$true] %s387
        %390 = dma.hbm_to_vmem [thread:$0]  %s377, 16, %s388, %s379
        %s391 = sadd.s32 %s249, 6
        %s392 = sshra.s32 %s391, 7
        %s393 = sand.u32 %s391, 127
        %s394 = sadd.s32 %s392, %s41
        %s395 = smul.u32 %s394, 128
        %s396 = sshra.s32 %s391, 7
        %s397 = sand.u32 %s391, 127
        %s398 = sadd.s32 %s395, %s397
        %s399 = sld [smem:[#allocation6 + %s398]]
        %s400 = smul.addr %s399, 16
        %s401 = scalar_lea.hbm %s4, %s400
        %s402 = scalar_lea.vmem [#allocation2], 6
        %s403 = scalar_lea.sflag [#allocation4], 6
        // Predicated region
        $region69: #{tpu_custom_call.1} parent=39 // pred_check
          _
        $region70: #{tpu_custom_call.1} parent=39 // pred_check_branch
          %405 = sbr.rel target = $region72
        $region71: #{tpu_custom_call.1} parent=39 // pred_region
          %406 = sst [smem:[#allocation16]] [#allocation29]
          %407 = sst [smem:[#allocation17]] [#allocation28]
        $region72: #{tpu_custom_call.1} parent=39 // pred_fallthru
          _
        %409 = shalt.err (0)
        %s411 = sshll.u32 %s402, 4
        %s412 = int_to_ptr.vmem [resolvable:$true] %s411
        %414 = dma.hbm_to_vmem [thread:$0]  %s401, 16, %s412, %s403
        %s415 = sadd.s32 %s249, 7
        %s416 = sshra.s32 %s415, 7
        %s417 = sand.u32 %s415, 127
        %s418 = sadd.s32 %s416, %s41
        %s419 = smul.u32 %s418, 128
        %s420 = sshra.s32 %s415, 7
        %s421 = sand.u32 %s415, 127
        %s422 = sadd.s32 %s419, %s421
        %s423 = sld [smem:[#allocation6 + %s422]]
        %s424 = smul.addr %s423, 16
        %s425 = scalar_lea.hbm %s4, %s424
        %s426 = scalar_lea.vmem [#allocation2], 7
        %s427 = scalar_lea.sflag [#allocation4], 7
        // Predicated region
        $region73: #{tpu_custom_call.1} parent=39 // pred_check
          _
        $region74: #{tpu_custom_call.1} parent=39 // pred_check_branch
          %429 = sbr.rel target = $region76
        $region75: #{tpu_custom_call.1} parent=39 // pred_region
          %430 = sst [smem:[#allocation16]] [#allocation31]
          %431 = sst [smem:[#allocation17]] [#allocation30]
        $region76: #{tpu_custom_call.1} parent=39 // pred_fallthru
          _
        %433 = shalt.err (0)
        %s435 = sshll.u32 %s426, 4
        %s436 = int_to_ptr.vmem [resolvable:$true] %s435
        %438 = dma.hbm_to_vmem [thread:$0]  %s425, 16, %s436, %s427
        %s439 = sld [smem:[#allocation7 + %s256]]
        %s440 = sld [smem:[#allocation8 + %s256]]
        %s441 = sld [smem:[#allocation9 + %s256]]
        %s442 = scalar_lea.vmem %s6, %s439
        %v443 = vld [vmem:[%s442] sm:$0x1]
        %s444 = scalar_lea.vmem [#allocation10], %s440
        %v445 = vld [vmem:[%s444] sm:$0x1]
        %v446 = vadd.f32 %v443, %v445
        %s447 = scalar_lea.vmem %s7, %s441
        %v448 = vld [vmem:[%s447] sm:$0x1]
        %v449 = vadd.f32 %v446, %v448
        %450 = vst [vmem:[#allocation3] sm:$0x1] %v449
        %s451 = sld [smem:[#allocation7 + %s278]]
        %s452 = sld [smem:[#allocation8 + %s278]]
        %s453 = sld [smem:[#allocation9 + %s278]]
        %s454 = scalar_lea.vmem %s6, %s451
        %v455 = vld [vmem:[%s454] sm:$0x1]
        %s456 = scalar_lea.vmem [#allocation10], %s452
        %v457 = vld [vmem:[%s456] sm:$0x1]
        %v458 = vadd.f32 %v455, %v457
        %s459 = scalar_lea.vmem %s7, %s453
        %v460 = vld [vmem:[%s459] sm:$0x1]
        %v461 = vadd.f32 %v458, %v460
        %462 = vst [vmem:[#allocation3 + $0x1] sm:$0x1] %v461
        %s463 = sld [smem:[#allocation7 + %s302]]
        %s464 = sld [smem:[#allocation8 + %s302]]
        %s465 = sld [smem:[#allocation9 + %s302]]
        %s466 = scalar_lea.vmem %s6, %s463
        %v467 = vld [vmem:[%s466] sm:$0x1]
        %s468 = scalar_lea.vmem [#allocation10], %s464
        %v469 = vld [vmem:[%s468] sm:$0x1]
        %v470 = vadd.f32 %v467, %v469
        %s471 = scalar_lea.vmem %s7, %s465
        %v472 = vld [vmem:[%s471] sm:$0x1]
        %v473 = vadd.f32 %v470, %v472
        %474 = vst [vmem:[#allocation3 + $0x2] sm:$0x1] %v473
        %s475 = sld [smem:[#allocation7 + %s326]]
        %s476 = sld [smem:[#allocation8 + %s326]]
        %s477 = sld [smem:[#allocation9 + %s326]]
        %s478 = scalar_lea.vmem %s6, %s475
        %v479 = vld [vmem:[%s478] sm:$0x1]
        %s480 = scalar_lea.vmem [#allocation10], %s476
        %v481 = vld [vmem:[%s480] sm:$0x1]
        %v482 = vadd.f32 %v479, %v481
        %s483 = scalar_lea.vmem %s7, %s477
        %v484 = vld [vmem:[%s483] sm:$0x1]
        %v485 = vadd.f32 %v482, %v484
        %486 = vst [vmem:[#allocation3 + $0x3] sm:$0x1] %v485
        %s487 = sld [smem:[#allocation7 + %s350]]
        %s488 = sld [smem:[#allocation8 + %s350]]
        %s489 = sld [smem:[#allocation9 + %s350]]
        %s490 = scalar_lea.vmem %s6, %s487
        %v491 = vld [vmem:[%s490] sm:$0x1]
        %s492 = scalar_lea.vmem [#allocation10], %s488
        %v493 = vld [vmem:[%s492] sm:$0x1]
        %v494 = vadd.f32 %v491, %v493
        %s495 = scalar_lea.vmem %s7, %s489
        %v496 = vld [vmem:[%s495] sm:$0x1]
        %v497 = vadd.f32 %v494, %v496
        %498 = vst [vmem:[#allocation3 + $0x4] sm:$0x1] %v497
        %s499 = sld [smem:[#allocation7 + %s374]]
        %s500 = sld [smem:[#allocation8 + %s374]]
        %s501 = sld [smem:[#allocation9 + %s374]]
        %s502 = scalar_lea.vmem %s6, %s499
        %v503 = vld [vmem:[%s502] sm:$0x1]
        %s504 = scalar_lea.vmem [#allocation10], %s500
        %v505 = vld [vmem:[%s504] sm:$0x1]
        %v506 = vadd.f32 %v503, %v505
        %s507 = scalar_lea.vmem %s7, %s501
        %v508 = vld [vmem:[%s507] sm:$0x1]
        %v509 = vadd.f32 %v506, %v508
        %510 = vst [vmem:[#allocation3 + $0x5] sm:$0x1] %v509
        %s511 = sld [smem:[#allocation7 + %s398]]
        %s512 = sld [smem:[#allocation8 + %s398]]
        %s513 = sld [smem:[#allocation9 + %s398]]
        %s514 = scalar_lea.vmem %s6, %s511
        %v515 = vld [vmem:[%s514] sm:$0x1]
        %s516 = scalar_lea.vmem [#allocation10], %s512
        %v517 = vld [vmem:[%s516] sm:$0x1]
        %v518 = vadd.f32 %v515, %v517
        %s519 = scalar_lea.vmem %s7, %s513
        %v520 = vld [vmem:[%s519] sm:$0x1]
        %v521 = vadd.f32 %v518, %v520
        %522 = vst [vmem:[#allocation3 + $0x6] sm:$0x1] %v521
        %s523 = sld [smem:[#allocation7 + %s422]]
        %s524 = sld [smem:[#allocation8 + %s422]]
        %s525 = sld [smem:[#allocation9 + %s422]]
        %s526 = scalar_lea.vmem %s6, %s523
        %v527 = vld [vmem:[%s526] sm:$0x1]
        %s528 = scalar_lea.vmem [#allocation10], %s524
        %v529 = vld [vmem:[%s528] sm:$0x1]
        %v530 = vadd.f32 %v527, %v529
        %s531 = scalar_lea.vmem %s7, %s525
        %v532 = vld [vmem:[%s531] sm:$0x1]
        %v533 = vadd.f32 %v530, %v532
        %534 = vst [vmem:[#allocation3 + $0x7] sm:$0x1] %v533
        %s535 = smul.u32 1, 1
        %s536 = sshll.u32 %s535, 4
        %537 = dma.done [#allocation4], %s536
        %s538 = sshll.u32 %s535, 4
        %539 = dma.done %s283, %s538
        %s540 = sshll.u32 %s535, 4
        %541 = dma.done %s307, %s540
        %s542 = sshll.u32 %s535, 4
        %543 = dma.done %s331, %s542
        %s544 = sshll.u32 %s535, 4
        %545 = dma.done %s355, %s544
        %s546 = sshll.u32 %s535, 4
        %547 = dma.done %s379, %s546
        %s548 = sshll.u32 %s535, 4
        %549 = dma.done %s403, %s548
        %s550 = sshll.u32 %s535, 4
        %551 = dma.done %s427, %s550
        %v552 = vld [vmem:[#allocation2] sm:$0xff]
        %v553 = vld [vmem:[#allocation3] sm:$0xff]
        %v554 = vadd.f32 %v552, %v553
        %555 = vadd.xlane.f32.xlu0 %v554
        %v556 = vpop.xlane.xlu0 %555
        %v557 = vmul.f32 %v556, 0.0078125
        %v558 = vmul.f32 %v554, %v554
        %559 = vadd.xlane.f32.xlu0 %v558
        %v560 = vpop.xlane.xlu0 %559
        %v561 = vmul.f32 %v560, 0.0078125
        %v562 = vmul.f32 %v557, %v557
        %v563 = vsub.f32 %v561, %v562
        %v564 = vadd.f32 %v563, 1e-12
        %v565 = vrsqrt.pop %v564
        %v566 = vsub.f32 %v554, %v557
        %v567 = vmul.f32 %v566, %v565
        %v568 = vld [vmem:[%s8] sm:$0x1]
        %v570 = vlaneseq
        %v571 = vshrl.u32 %v570, 7
        %v572 = vsub.s32 0, %v571
        %v573 = vrot.slane %v568, %v572
        %v575 = vmul.f32 %v567, %v573
        %v576 = vld [vmem:[%s9] sm:$0x1]
        %v578 = vlaneseq
        %v579 = vshrl.u32 %v578, 7
        %v580 = vsub.s32 0, %v579
        %v581 = vrot.slane %v576, %v580
        %v583 = vadd.f32 %v575, %v581
        %584 = vst [vmem:[%s248] sm:$0xff] %v583
        %s585 = sand.u32 %s164, 1
        %s586 = scalar_lea.sflag [#allocation12], %s585
        %s587 = sand.u32 %s164, 1
        %s588 = smul.addr %s587, 8
        %s589 = scalar_lea.vmem [#allocation13], %s588
        // Predicated region
        $region77: #{tpu_custom_call.1} parent=39 // pred_check
          %p590 = pneg %p174
        $region78: #{tpu_custom_call.1} parent=39 // pred_check_branch
          %592 = sbr.rel (%p590) target = $region80
        $region79: #{tpu_custom_call.1} parent=39 // pred_region
          %s594 = ssub.s32 128, 128
          %595 = vsyncadd %s586, %s594
          %s596 = sadd.s32 %s42, %s41
          %s597 = smul.addr %s596, 128
          %s598 = scalar_lea.hbm %s10, %s597
          %s600 = sshll.u32 %s589, 4
          %s601 = int_to_ptr.vmem [resolvable:$true] %s600
          %603 = dma.vmem_to_hbm [thread:$0]  %s601, 128, %s598, %s586
        $region80: #{tpu_custom_call.1} parent=39 // pred_fallthru
          _
      $region40: #{tpu_custom_call.1} parent=5 // pred_fallthru
        _
      %p604 = scmp.le.s32.totalorder 2, %s32
      // Predicated region
      $region81: #{tpu_custom_call.1} parent=5 // pred_check
        %p605 = pneg %p604
      $region82: #{tpu_custom_call.1} parent=5 // pred_check_branch
        %607 = sbr.rel (%p605) target = $region84
      $region83: #{tpu_custom_call.1} parent=5 // pred_region
        %s608 = ssub.s32 %s32, 2
        // Predicated region
        $region85: #{tpu_custom_call.1} parent=83 // pred_check
          %p609 = pneg %p180
        $region86: #{tpu_custom_call.1} parent=83 // pred_check_branch
          %611 = sbr.rel (%p609) target = $region88
        $region87: #{tpu_custom_call.1} parent=83 // pred_region
          %s612 = sand.u32 %s165, 1
          %s613 = scalar_lea.sflag [#allocation12], %s612
          %s614 = sand.u32 %s165, 1
          %s615 = smul.addr %s614, 8
          %s616 = scalar_lea.vmem [#allocation13], %s615
          %617 = dma.done %s613, 128
        $region88: #{tpu_custom_call.1} parent=83 // pred_fallthru
          _
      $region84: #{tpu_custom_call.1} parent=5 // pred_fallthru
        _
    $region6: #{tpu_custom_call.1} parent=1 // loop_footer
      %s36 = sadd.s32 1, %s32
    $region7: #{tpu_custom_call.1} parent=1 // loop_footer_branch
      %31 = sbr.rel target = $region3
    $region8: #{tpu_custom_call.1} parent=1 // loop_exit
      _
    %618 = vsyncpa [#allocation11], 1
    %s619 = scalar_lea.sflag [#allocation11], 1
    %620 = vsyncpa %s619, 1
    %621 = vsyncpa [#allocation12], 1
    %s622 = scalar_lea.sflag [#allocation12], 1
    %623 = vsyncpa %s622, 1
  %624 = vsyncmov [#allocation4]
  %s625 = vpop.sfrf %624
  %p626 = scmp.eq.s32.totalorder %s625, 0
  %p627 = pneg %p626
  %629 = shalt.err (%p627)
  %s630 = scalar_lea.sflag [#allocation4], 1
  %631 = vsyncmov %s630
  %s632 = vpop.sfrf %631
  %p633 = scmp.eq.s32.totalorder %s632, 0
  %p634 = pneg %p633
  %636 = shalt.err (%p634)
  %s637 = scalar_lea.sflag [#allocation4], 2
  %638 = vsyncmov %s637
  %s639 = vpop.sfrf %638
  %p640 = scmp.eq.s32.totalorder %s639, 0
  %p641 = pneg %p640
  %643 = shalt.err (%p641)
  %s644 = scalar_lea.sflag [#allocation4], 3
  %645 = vsyncmov %s644
  %s646 = vpop.sfrf %645
  %p647 = scmp.eq.s32.totalorder %s646, 0
  %p648 = pneg %p647
  %650 = shalt.err (%p648)
  %s651 = scalar_lea.sflag [#allocation4], 4
  %652 = vsyncmov %s651
  %s653 = vpop.sfrf %652
  %p654 = scmp.eq.s32.totalorder %s653, 0
  %p655 = pneg %p654
  %657 = shalt.err (%p655)
  %s658 = scalar_lea.sflag [#allocation4], 5
  %659 = vsyncmov %s658
  %s660 = vpop.sfrf %659
  %p661 = scmp.eq.s32.totalorder %s660, 0
  %p662 = pneg %p661
  %664 = shalt.err (%p662)
  %s665 = scalar_lea.sflag [#allocation4], 6
  %666 = vsyncmov %s665
  %s667 = vpop.sfrf %666
  %p668 = scmp.eq.s32.totalorder %s667, 0
  %p669 = pneg %p668
  %671 = shalt.err (%p669)
  %s672 = scalar_lea.sflag [#allocation4], 7
  %673 = vsyncmov %s672
  %s674 = vpop.sfrf %673
  %p675 = scmp.eq.s32.totalorder %s674, 0
  %p676 = pneg %p675
  %678 = shalt.err (%p676)

</llo_original>
